<compile_context>
chip_gen: v5e
topology: v5e:2x2
jax: 0.10.0
libtpu: 0.0.40
codegen_flags: <defaults>
</compile_context>

<pallas_src>
import jax
import jax.numpy as jnp
from jax.experimental import pallas as pl
from jax.experimental.pallas import tpu as pltpu


# ----------------------------------------------------------------------------
# Fused Pallas kernel: the entire V1 forward in one shot.
# ----------------------------------------------------------------------------
def _v1_fused_kernel(
    # inputs
    text_ref, audio_ref, video_ref,
    tl_w, tl_b,
    a_sc, a_sh, a_w1, a_b1, a_w2, a_b2, a_w3, a_b3,
    v_sc, v_sh, v_w1, v_b1, v_w2, v_b2, v_w3, v_b3,
    pt_w1, pt_b1, pt_w2, pt_b2, pt_w3, pt_b3,
    pa_w1, pa_b1, pa_w2, pa_b2, pa_w3, pa_b3,
    pv_w1, pv_b1, pv_w2, pv_b2, pv_w3, pv_b3,
    pf_w1t, pf_w1a, pf_w1v, pf_b1, pf_w2, pf_b2, pf_w3, pf_b3,
    # outputs
    xt3_ref, xa3_ref, xv3_ref, fdata_ref, tavm_ref,
):
    def lin(x, w_ref, b_ref, relu=False):
        y = jnp.dot(x, w_ref[...], preferred_element_type=jnp.float32) + b_ref[...]
        if relu:
            y = jnp.maximum(y, 0.0)
        return y

    # --- text branch ------------------------------------------------------
    text_x = text_ref[...].astype(jnp.float32)
    text_h = lin(text_x, tl_w, tl_b)                       # tliner (no act)

    # --- audio SubNet (BN folded affine, dropout=identity, 3x Linear+ReLU) --
    a = audio_ref[...].astype(jnp.float32) * a_sc[...] + a_sh[...]
    a = lin(a, a_w1, a_b1, relu=True)
    a = lin(a, a_w2, a_b2, relu=True)
    audio_h = lin(a, a_w3, a_b3, relu=True)

    # --- video SubNet -------------------------------------------------------
    v = video_ref[...].astype(jnp.float32) * v_sc[...] + v_sh[...]
    v = lin(v, v_w1, v_b1, relu=True)
    v = lin(v, v_w2, v_b2, relu=True)
    video_h = lin(v, v_w3, v_b3, relu=True)

    # --- post text / audio / video heads ------------------------------------
    x_t3 = lin(lin(text_h, pt_w1, pt_b1, relu=True), pt_w2, pt_b2, relu=True)
    out_t = lin(x_t3, pt_w3, pt_b3)                        # (B, 1)

    x_a3 = lin(lin(audio_h, pa_w1, pa_b1, relu=True), pa_w2, pa_b2, relu=True)
    out_a = lin(x_a3, pa_w3, pa_b3)                        # (B, 1)

    x_v3 = lin(lin(video_h, pv_w1, pv_b1, relu=True), pv_w2, pv_b2, relu=True)
    out_v = lin(x_v3, pv_w3, pv_b3)                        # (B, 1)

    # --- fusion (split-weight form of concat([xt3,xa3,xv3]) @ W1 + b1) ------
    # NOTE: no activation after fusion layers 1 & 2, per reference forward.
    f1 = (
        jnp.dot(x_t3, pf_w1t[...], preferred_element_type=jnp.float32)
        + jnp.dot(x_a3, pf_w1a[...], preferred_element_type=jnp.float32)
        + jnp.dot(x_v3, pf_w1v[...], preferred_element_type=jnp.float32)
        + pf_b1[...]
    )
    fusion_data = jnp.dot(f1, pf_w2[...], preferred_element_type=jnp.float32) + pf_b2[...]
    f3 = jnp.dot(fusion_data, pf_w3[...], preferred_element_type=jnp.float32) + pf_b3[...]
    out_m = jax.nn.sigmoid(f3) * 2.0 - 1.0                 # output_range=2, shift=-1

    # --- stores --------------------------------------------------------------
    xt3_ref[...] = x_t3.astype(xt3_ref.dtype)
    xa3_ref[...] = x_a3.astype(xa3_ref.dtype)
    xv3_ref[...] = x_v3.astype(xv3_ref.dtype)
    fdata_ref[...] = fusion_data.astype(fdata_ref.dtype)
    # lane-denser combined scalar-head output: columns [T, A, V, M]
    tavm_ref[...] = jnp.concatenate([out_t, out_a, out_v, out_m], axis=-1).astype(
        tavm_ref.dtype
    )


# ----------------------------------------------------------------------------
# Parameter construction (deterministic, PyTorch-Linear-style init)
# ----------------------------------------------------------------------------
def _linear_params(key, in_dim, out_dim):
    kw, kb = jax.random.split(key)
    bound = 1.0 / jnp.sqrt(jnp.float32(in_dim))
    # stored pre-transposed: (in, out)
    w = jax.random.uniform(kw, (in_dim, out_dim), jnp.float32, -bound, bound)
    b = jax.random.uniform(kb, (1, out_dim), jnp.float32, -bound, bound)
    return w, b


def make_params(key, cfg):
    text_in, audio_in, video_in = cfg["feature_dims"]
    text_h, audio_h, video_h = cfg["hidden_dims"]
    pt, pa, pv = cfg["post_text_dim"], cfg["post_audio_dim"], cfg["post_video_dim"]
    pf = cfg["post_fusion_out"]

    keys = iter(jax.random.split(key, 32))
    p = {}

    # tliner
    p["tliner"] = _linear_params(next(keys), text_in, text_h)

    # SubNet(audio)  -- BatchNorm1d eval (defaults: mean=0, var=1, gamma=1, beta=0)
    eps = 1e-5
    p["a_bn_scale"] = jnp.ones((1, audio_in), jnp.float32) / jnp.sqrt(1.0 + eps)
    p["a_bn_shift"] = jnp.zeros((1, audio_in), jnp.float32)
    p["a_l1"] = _linear_params(next(keys), audio_in, audio_h)
    p["a_l2"] = _linear_params(next(keys), audio_h, audio_h)
    p["a_l3"] = _linear_params(next(keys), audio_h, audio_h)

    # SubNet(video)
    p["v_bn_scale"] = jnp.ones((1, video_in), jnp.float32) / jnp.sqrt(1.0 + eps)
    p["v_bn_shift"] = jnp.zeros((1, video_in), jnp.float32)
    p["v_l1"] = _linear_params(next(keys), video_in, video_h)
    p["v_l2"] = _linear_params(next(keys), video_h, video_h)
    p["v_l3"] = _linear_params(next(keys), video_h, video_h)

    # post text / audio / video heads
    p["pt_l1"] = _linear_params(next(keys), text_h, pt)
    p["pt_l2"] = _linear_params(next(keys), pt, pt)
    p["pt_l3"] = _linear_params(next(keys), pt, 1)
    p["pa_l1"] = _linear_params(next(keys), audio_h, pa)
    p["pa_l2"] = _linear_params(next(keys), pa, pa)
    p["pa_l3"] = _linear_params(next(keys), pa, 1)
    p["pv_l1"] = _linear_params(next(keys), video_h, pv)
    p["pv_l2"] = _linear_params(next(keys), pv, pv)
    p["pv_l3"] = _linear_params(next(keys), pv, 1)

    # post fusion (full concat-form weight; split into slabs at call time)
    p["pf_l1"] = _linear_params(next(keys), pt + pa + pv, pf)
    p["pf_l2"] = _linear_params(next(keys), pf, pf)
    p["pf_l3"] = _linear_params(next(keys), pf, 1)
    return p


# ----------------------------------------------------------------------------
# V1 forward (single fused Pallas call)
# ----------------------------------------------------------------------------
def v1_forward(params, text_x, audio_x, video_x, cfg):
    p = params
    pt, pa, pv = cfg["post_text_dim"], cfg["post_audio_dim"], cfg["post_video_dim"]
    pf = cfg["post_fusion_out"]
    B = audio_x.shape[0]

    # [CLS] selection (BertTextEncoder stand-in): only the row the kernel needs.
    text_cls = text_x[:, 0, :]

    # Split post_fusion_layer_1 weight into per-modality slabs so the kernel
    # never materializes the concatenation.
    pf_w1 = p["pf_l1"][0]
    pf_w1t = pf_w1[:pt, :]
    pf_w1a = pf_w1[pt : pt + pa, :]
    pf_w1v = pf_w1[pt + pa :, :]

    inputs = [
        text_cls, audio_x, video_x,
        p["tliner"][0], p["tliner"][1],
        p["a_bn_scale"], p["a_bn_shift"],
        p["a_l1"][0], p["a_l1"][1], p["a_l2"][0], p["a_l2"][1], p["a_l3"][0], p["a_l3"][1],
        p["v_bn_scale"], p["v_bn_shift"],
        p["v_l1"][0], p["v_l1"][1], p["v_l2"][0], p["v_l2"][1], p["v_l3"][0], p["v_l3"][1],
        p["pt_l1"][0], p["pt_l1"][1], p["pt_l2"][0], p["pt_l2"][1], p["pt_l3"][0], p["pt_l3"][1],
        p["pa_l1"][0], p["pa_l1"][1], p["pa_l2"][0], p["pa_l2"][1], p["pa_l3"][0], p["pa_l3"][1],
        p["pv_l1"][0], p["pv_l1"][1], p["pv_l2"][0], p["pv_l2"][1], p["pv_l3"][0], p["pv_l3"][1],
        pf_w1t, pf_w1a, pf_w1v, p["pf_l1"][1],
        p["pf_l2"][0], p["pf_l2"][1], p["pf_l3"][0], p["pf_l3"][1],
    ]

    vmem = pl.BlockSpec(memory_space=pltpu.MemorySpace.VMEM)
    out_shapes = (
        jax.ShapeDtypeStruct((B, pt), jnp.float32),   # Feature_t (x_t3)
        jax.ShapeDtypeStruct((B, pa), jnp.float32),   # Feature_a (x_a3)
        jax.ShapeDtypeStruct((B, pv), jnp.float32),   # Feature_v (x_v3)
        jax.ShapeDtypeStruct((B, pf), jnp.float32),   # Feature_f (fusion_data)
        jax.ShapeDtypeStruct((B, 4), jnp.float32),    # [T, A, V, M] combined
    )

    x_t3, x_a3, x_v3, fusion_data, tavm = pl.pallas_call(
        _v1_fused_kernel,
        out_shape=out_shapes,
        in_specs=[vmem] * len(inputs),
        out_specs=(vmem,) * len(out_shapes),
    )(*inputs)

    return {
        "Feature_t": x_t3,
        "Feature_a": x_a3,
        "Feature_v": x_v3,
        "Feature_f": fusion_data,
        "M": tavm[:, 3:4],
        "T": tavm[:, 0:1],
        "A": tavm[:, 1:2],
        "V": tavm[:, 2:3],
    }


# ----------------------------------------------------------------------------
# Pure-jnp reference (same math, no Pallas) for correctness check
# ----------------------------------------------------------------------------
def v1_forward_ref(p, text_x, audio_x, video_x):
    def lin(x, wb, act=None):
        w, b = wb
        y = x @ w + b
        if act == "relu":
            y = jnp.maximum(y, 0.0)
        elif act == "sigmoid_range":
            y = jax.nn.sigmoid(y) * 2.0 - 1.0
        return y

    text_cls = text_x[:, 0, :]
    text_h = lin(text_cls, p["tliner"])
    a = audio_x * p["a_bn_scale"] + p["a_bn_shift"]
    a = lin(a, p["a_l1"], "relu"); a = lin(a, p["a_l2"], "relu"); audio_h = lin(a, p["a_l3"], "relu")
    v = video_x * p["v_bn_scale"] + p["v_bn_shift"]
    v = lin(v, p["v_l1"], "relu"); v = lin(v, p["v_l2"], "relu"); video_h = lin(v, p["v_l3"], "relu")
    x_t3 = lin(lin(text_h, p["pt_l1"], "relu"), p["pt_l2"], "relu")
    output_text = lin(x_t3, p["pt_l3"])
    x_a3 = lin(lin(audio_h, p["pa_l1"], "relu"), p["pa_l2"], "relu")
    output_audio = lin(x_a3, p["pa_l3"])
    x_v3 = lin(lin(video_h, p["pv_l1"], "relu"), p["pv_l2"], "relu")
    output_video = lin(x_v3, p["pv_l3"])
    fusion_cat = jnp.concatenate([x_t3, x_a3, x_v3], axis=-1)
    fusion_data = lin(lin(fusion_cat, p["pf_l1"]), p["pf_l2"])
    output_fusion = lin(fusion_data, p["pf_l3"], "sigmoid_range")
    return {
        "Feature_t": x_t3, "Feature_a": x_a3, "Feature_v": x_v3,
        "Feature_f": fusion_data, "M": output_fusion,
        "T": output_text, "A": output_audio, "V": output_video,
    }


# ----------------------------------------------------------------------------
if __name__ == "__main__":
    cfg = {
        "feature_dims": (32, 16, 24),   # text_in, audio_in, video_in
        "hidden_dims": (32, 16, 16),    # text_hidden, audio_hidden, video_hidden
        "post_text_dim": 16,
        "post_audio_dim": 16,
        "post_video_dim": 16,
        "post_fusion_out": 16,
    }
    batch, seq = 8, 8
    text_in, audio_in, video_in = cfg["feature_dims"]

    key = jax.random.PRNGKey(0)
    k_param, k_t, k_a, k_v = jax.random.split(key, 4)
    params = make_params(k_param, cfg)

    text_x = jax.random.normal(k_t, (batch, seq, text_in), jnp.float32)
    audio_x3 = jax.random.normal(k_a, (batch, 1, audio_in), jnp.float32)
    video_x3 = jax.random.normal(k_v, (batch, 1, video_in), jnp.float32)

    # mimic .squeeze(1) from the PyTorch forward
    audio_x = jnp.squeeze(audio_x3, axis=1)
    video_x = jnp.squeeze(video_x3, axis=1)

    fwd = jax.jit(lambda prm, t, a, v: v1_forward(prm, t, a, v, cfg))
    out = fwd(params, text_x, audio_x, video_x)
    out = jax.tree_util.tree_map(jax.block_until_ready, out)

    ref = v1_forward_ref(params, text_x, audio_x, video_x)
    for name in out:
        assert out[name].shape == ref[name].shape, name
        assert jnp.allclose(out[name], ref[name], atol=1e-4, rtol=1e-4), name

    print("KERNEL_OK")
</pallas_src>

<mosaic_0001>
module attributes {stable_mosaic.version = 11 : i64} {
  func.func @_v1_fused_kernel(%arg0: memref<8x32xf32, #tpu.memory_space<vmem>>, %arg1: memref<8x16xf32, #tpu.memory_space<vmem>>, %arg2: memref<8x24xf32, #tpu.memory_space<vmem>>, %arg3: memref<32x32xf32, #tpu.memory_space<vmem>>, %arg4: memref<1x32xf32, #tpu.memory_space<vmem>>, %arg5: memref<1x16xf32, #tpu.memory_space<vmem>>, %arg6: memref<1x16xf32, #tpu.memory_space<vmem>>, %arg7: memref<16x16xf32, #tpu.memory_space<vmem>>, %arg8: memref<1x16xf32, #tpu.memory_space<vmem>>, %arg9: memref<16x16xf32, #tpu.memory_space<vmem>>, %arg10: memref<1x16xf32, #tpu.memory_space<vmem>>, %arg11: memref<16x16xf32, #tpu.memory_space<vmem>>, %arg12: memref<1x16xf32, #tpu.memory_space<vmem>>, %arg13: memref<1x24xf32, #tpu.memory_space<vmem>>, %arg14: memref<1x24xf32, #tpu.memory_space<vmem>>, %arg15: memref<24x16xf32, #tpu.memory_space<vmem>>, %arg16: memref<1x16xf32, #tpu.memory_space<vmem>>, %arg17: memref<16x16xf32, #tpu.memory_space<vmem>>, %arg18: memref<1x16xf32, #tpu.memory_space<vmem>>, %arg19: memref<16x16xf32, #tpu.memory_space<vmem>>, %arg20: memref<1x16xf32, #tpu.memory_space<vmem>>, %arg21: memref<32x16xf32, #tpu.memory_space<vmem>>, %arg22: memref<1x16xf32, #tpu.memory_space<vmem>>, %arg23: memref<16x16xf32, #tpu.memory_space<vmem>>, %arg24: memref<1x16xf32, #tpu.memory_space<vmem>>, %arg25: memref<16x1xf32, #tpu.memory_space<vmem>>, %arg26: memref<1x1xf32, #tpu.memory_space<vmem>>, %arg27: memref<16x16xf32, #tpu.memory_space<vmem>>, %arg28: memref<1x16xf32, #tpu.memory_space<vmem>>, %arg29: memref<16x16xf32, #tpu.memory_space<vmem>>, %arg30: memref<1x16xf32, #tpu.memory_space<vmem>>, %arg31: memref<16x1xf32, #tpu.memory_space<vmem>>, %arg32: memref<1x1xf32, #tpu.memory_space<vmem>>, %arg33: memref<16x16xf32, #tpu.memory_space<vmem>>, %arg34: memref<1x16xf32, #tpu.memory_space<vmem>>, %arg35: memref<16x16xf32, #tpu.memory_space<vmem>>, %arg36: memref<1x16xf32, #tpu.memory_space<vmem>>, %arg37: memref<16x1xf32, #tpu.memory_space<vmem>>, %arg38: memref<1x1xf32, #tpu.memory_space<vmem>>, %arg39: memref<16x16xf32, #tpu.memory_space<vmem>>, %arg40: memref<16x16xf32, #tpu.memory_space<vmem>>, %arg41: memref<16x16xf32, #tpu.memory_space<vmem>>, %arg42: memref<1x16xf32, #tpu.memory_space<vmem>>, %arg43: memref<16x16xf32, #tpu.memory_space<vmem>>, %arg44: memref<1x16xf32, #tpu.memory_space<vmem>>, %arg45: memref<16x1xf32, #tpu.memory_space<vmem>>, %arg46: memref<1x1xf32, #tpu.memory_space<vmem>>, %arg47: memref<8x16xf32, #tpu.memory_space<vmem>>, %arg48: memref<8x16xf32, #tpu.memory_space<vmem>>, %arg49: memref<8x16xf32, #tpu.memory_space<vmem>>, %arg50: memref<8x16xf32, #tpu.memory_space<vmem>>, %arg51: memref<8x4xf32, #tpu.memory_space<vmem>>) attributes {dimension_semantics = [], scalar_prefetch = 0 : i64, scratch_operands = 0 : i64, tpu.core_type = #tpu.core_type<tc>} {
    %c0 = arith.constant 0 : index
    %c0_0 = arith.constant 0 : index
    %0 = vector.load %arg0[%c0, %c0_0] : memref<8x32xf32, #tpu.memory_space<vmem>>, vector<8x32xf32>
    %c0_1 = arith.constant 0 : index
    %c0_2 = arith.constant 0 : index
    %1 = vector.load %arg3[%c0_1, %c0_2] : memref<32x32xf32, #tpu.memory_space<vmem>>, vector<32x32xf32>
    %cst = arith.constant dense<0.000000e+00> : vector<8x32xf32>
    %2 = tpu.matmul %0, %1, %cst {dimension_numbers = #tpu.dot_dimension_numbers<[1], [0], [0], [1], [0, 0, 1, 1], [], []>} : vector<8x32xf32>, vector<32x32xf32>, vector<8x32xf32> -> vector<8x32xf32>
    %c0_3 = arith.constant 0 : index
    %c0_4 = arith.constant 0 : index
    %3 = vector.load %arg4[%c0_3, %c0_4] : memref<1x32xf32, #tpu.memory_space<vmem>>, vector<1x32xf32>
    %4 = vector.broadcast %3 : vector<1x32xf32> to vector<8x32xf32>
    %5 = arith.addf %2, %4 : vector<8x32xf32>
    %c0_5 = arith.constant 0 : index
    %c0_6 = arith.constant 0 : index
    %6 = vector.load %arg1[%c0_5, %c0_6] : memref<8x16xf32, #tpu.memory_space<vmem>>, vector<8x16xf32>
    %c0_7 = arith.constant 0 : index
    %c0_8 = arith.constant 0 : index
    %7 = vector.load %arg5[%c0_7, %c0_8] : memref<1x16xf32, #tpu.memory_space<vmem>>, vector<1x16xf32>
    %8 = vector.broadcast %7 : vector<1x16xf32> to vector<8x16xf32>
    %9 = arith.mulf %6, %8 : vector<8x16xf32>
    %c0_9 = arith.constant 0 : index
    %c0_10 = arith.constant 0 : index
    %10 = vector.load %arg6[%c0_9, %c0_10] : memref<1x16xf32, #tpu.memory_space<vmem>>, vector<1x16xf32>
    %11 = vector.broadcast %10 : vector<1x16xf32> to vector<8x16xf32>
    %12 = arith.addf %9, %11 : vector<8x16xf32>
    %c0_11 = arith.constant 0 : index
    %c0_12 = arith.constant 0 : index
    %13 = vector.load %arg7[%c0_11, %c0_12] : memref<16x16xf32, #tpu.memory_space<vmem>>, vector<16x16xf32>
    %cst_13 = arith.constant dense<0.000000e+00> : vector<8x16xf32>
    %14 = tpu.matmul %12, %13, %cst_13 {dimension_numbers = #tpu.dot_dimension_numbers<[1], [0], [0], [1], [0, 0, 1, 1], [], []>} : vector<8x16xf32>, vector<16x16xf32>, vector<8x16xf32> -> vector<8x16xf32>
    %c0_14 = arith.constant 0 : index
    %c0_15 = arith.constant 0 : index
    %15 = vector.load %arg8[%c0_14, %c0_15] : memref<1x16xf32, #tpu.memory_space<vmem>>, vector<1x16xf32>
    %16 = vector.broadcast %15 : vector<1x16xf32> to vector<8x16xf32>
    %17 = arith.addf %14, %16 : vector<8x16xf32>
    %cst_16 = arith.constant 0.000000e+00 : f32
    %18 = vector.broadcast %cst_16 : f32 to vector<8x16xf32>
    %19 = arith.maximumf %17, %18 : vector<8x16xf32>
    %c0_17 = arith.constant 0 : index
    %c0_18 = arith.constant 0 : index
    %20 = vector.load %arg9[%c0_17, %c0_18] : memref<16x16xf32, #tpu.memory_space<vmem>>, vector<16x16xf32>
    %cst_19 = arith.constant dense<0.000000e+00> : vector<8x16xf32>
    %21 = tpu.matmul %19, %20, %cst_19 {dimension_numbers = #tpu.dot_dimension_numbers<[1], [0], [0], [1], [0, 0, 1, 1], [], []>} : vector<8x16xf32>, vector<16x16xf32>, vector<8x16xf32> -> vector<8x16xf32>
    %c0_20 = arith.constant 0 : index
    %c0_21 = arith.constant 0 : index
    %22 = vector.load %arg10[%c0_20, %c0_21] : memref<1x16xf32, #tpu.memory_space<vmem>>, vector<1x16xf32>
    %23 = vector.broadcast %22 : vector<1x16xf32> to vector<8x16xf32>
    %24 = arith.addf %21, %23 : vector<8x16xf32>
    %cst_22 = arith.constant 0.000000e+00 : f32
    %25 = vector.broadcast %cst_22 : f32 to vector<8x16xf32>
    %26 = arith.maximumf %24, %25 : vector<8x16xf32>
    %c0_23 = arith.constant 0 : index
    %c0_24 = arith.constant 0 : index
    %27 = vector.load %arg11[%c0_23, %c0_24] : memref<16x16xf32, #tpu.memory_space<vmem>>, vector<16x16xf32>
    %cst_25 = arith.constant dense<0.000000e+00> : vector<8x16xf32>
    %28 = tpu.matmul %26, %27, %cst_25 {dimension_numbers = #tpu.dot_dimension_numbers<[1], [0], [0], [1], [0, 0, 1, 1], [], []>} : vector<8x16xf32>, vector<16x16xf32>, vector<8x16xf32> -> vector<8x16xf32>
    %c0_26 = arith.constant 0 : index
    %c0_27 = arith.constant 0 : index
    %29 = vector.load %arg12[%c0_26, %c0_27] : memref<1x16xf32, #tpu.memory_space<vmem>>, vector<1x16xf32>
    %30 = vector.broadcast %29 : vector<1x16xf32> to vector<8x16xf32>
    %31 = arith.addf %28, %30 : vector<8x16xf32>
    %cst_28 = arith.constant 0.000000e+00 : f32
    %32 = vector.broadcast %cst_28 : f32 to vector<8x16xf32>
    %33 = arith.maximumf %31, %32 : vector<8x16xf32>
    %c0_29 = arith.constant 0 : index
    %c0_30 = arith.constant 0 : index
    %34 = vector.load %arg2[%c0_29, %c0_30] : memref<8x24xf32, #tpu.memory_space<vmem>>, vector<8x24xf32>
    %c0_31 = arith.constant 0 : index
    %c0_32 = arith.constant 0 : index
    %35 = vector.load %arg13[%c0_31, %c0_32] : memref<1x24xf32, #tpu.memory_space<vmem>>, vector<1x24xf32>
    %36 = vector.broadcast %35 : vector<1x24xf32> to vector<8x24xf32>
    %37 = arith.mulf %34, %36 : vector<8x24xf32>
    %c0_33 = arith.constant 0 : index
    %c0_34 = arith.constant 0 : index
    %38 = vector.load %arg14[%c0_33, %c0_34] : memref<1x24xf32, #tpu.memory_space<vmem>>, vector<1x24xf32>
    %39 = vector.broadcast %38 : vector<1x24xf32> to vector<8x24xf32>
    %40 = arith.addf %37, %39 : vector<8x24xf32>
    %c0_35 = arith.constant 0 : index
    %c0_36 = arith.constant 0 : index
    %41 = vector.load %arg15[%c0_35, %c0_36] : memref<24x16xf32, #tpu.memory_space<vmem>>, vector<24x16xf32>
    %cst_37 = arith.constant dense<0.000000e+00> : vector<8x16xf32>
    %42 = tpu.matmul %40, %41, %cst_37 {dimension_numbers = #tpu.dot_dimension_numbers<[1], [0], [0], [1], [0, 0, 1, 1], [], []>} : vector<8x24xf32>, vector<24x16xf32>, vector<8x16xf32> -> vector<8x16xf32>
    %c0_38 = arith.constant 0 : index
    %c0_39 = arith.constant 0 : index
    %43 = vector.load %arg16[%c0_38, %c0_39] : memref<1x16xf32, #tpu.memory_space<vmem>>, vector<1x16xf32>
    %44 = vector.broadcast %43 : vector<1x16xf32> to vector<8x16xf32>
    %45 = arith.addf %42, %44 : vector<8x16xf32>
    %cst_40 = arith.constant 0.000000e+00 : f32
    %46 = vector.broadcast %cst_40 : f32 to vector<8x16xf32>
    %47 = arith.maximumf %45, %46 : vector<8x16xf32>
    %c0_41 = arith.constant 0 : index
    %c0_42 = arith.constant 0 : index
    %48 = vector.load %arg17[%c0_41, %c0_42] : memref<16x16xf32, #tpu.memory_space<vmem>>, vector<16x16xf32>
    %cst_43 = arith.constant dense<0.000000e+00> : vector<8x16xf32>
    %49 = tpu.matmul %47, %48, %cst_43 {dimension_numbers = #tpu.dot_dimension_numbers<[1], [0], [0], [1], [0, 0, 1, 1], [], []>} : vector<8x16xf32>, vector<16x16xf32>, vector<8x16xf32> -> vector<8x16xf32>
    %c0_44 = arith.constant 0 : index
    %c0_45 = arith.constant 0 : index
    %50 = vector.load %arg18[%c0_44, %c0_45] : memref<1x16xf32, #tpu.memory_space<vmem>>, vector<1x16xf32>
    %51 = vector.broadcast %50 : vector<1x16xf32> to vector<8x16xf32>
    %52 = arith.addf %49, %51 : vector<8x16xf32>
    %cst_46 = arith.constant 0.000000e+00 : f32
    %53 = vector.broadcast %cst_46 : f32 to vector<8x16xf32>
    %54 = arith.maximumf %52, %53 : vector<8x16xf32>
    %c0_47 = arith.constant 0 : index
    %c0_48 = arith.constant 0 : index
    %55 = vector.load %arg19[%c0_47, %c0_48] : memref<16x16xf32, #tpu.memory_space<vmem>>, vector<16x16xf32>
    %cst_49 = arith.constant dense<0.000000e+00> : vector<8x16xf32>
    %56 = tpu.matmul %54, %55, %cst_49 {dimension_numbers = #tpu.dot_dimension_numbers<[1], [0], [0], [1], [0, 0, 1, 1], [], []>} : vector<8x16xf32>, vector<16x16xf32>, vector<8x16xf32> -> vector<8x16xf32>
    %c0_50 = arith.constant 0 : index
    %c0_51 = arith.constant 0 : index
    %57 = vector.load %arg20[%c0_50, %c0_51] : memref<1x16xf32, #tpu.memory_space<vmem>>, vector<1x16xf32>
    %58 = vector.broadcast %57 : vector<1x16xf32> to vector<8x16xf32>
    %59 = arith.addf %56, %58 : vector<8x16xf32>
    %cst_52 = arith.constant 0.000000e+00 : f32
    %60 = vector.broadcast %cst_52 : f32 to vector<8x16xf32>
    %61 = arith.maximumf %59, %60 : vector<8x16xf32>
    %c0_53 = arith.constant 0 : index
    %c0_54 = arith.constant 0 : index
    %62 = vector.load %arg21[%c0_53, %c0_54] : memref<32x16xf32, #tpu.memory_space<vmem>>, vector<32x16xf32>
    %cst_55 = arith.constant dense<0.000000e+00> : vector<8x16xf32>
    %63 = tpu.matmul %5, %62, %cst_55 {dimension_numbers = #tpu.dot_dimension_numbers<[1], [0], [0], [1], [0, 0, 1, 1], [], []>} : vector<8x32xf32>, vector<32x16xf32>, vector<8x16xf32> -> vector<8x16xf32>
    %c0_56 = arith.constant 0 : index
    %c0_57 = arith.constant 0 : index
    %64 = vector.load %arg22[%c0_56, %c0_57] : memref<1x16xf32, #tpu.memory_space<vmem>>, vector<1x16xf32>
    %65 = vector.broadcast %64 : vector<1x16xf32> to vector<8x16xf32>
    %66 = arith.addf %63, %65 : vector<8x16xf32>
    %cst_58 = arith.constant 0.000000e+00 : f32
    %67 = vector.broadcast %cst_58 : f32 to vector<8x16xf32>
    %68 = arith.maximumf %66, %67 : vector<8x16xf32>
    %c0_59 = arith.constant 0 : index
    %c0_60 = arith.constant 0 : index
    %69 = vector.load %arg23[%c0_59, %c0_60] : memref<16x16xf32, #tpu.memory_space<vmem>>, vector<16x16xf32>
    %cst_61 = arith.constant dense<0.000000e+00> : vector<8x16xf32>
    %70 = tpu.matmul %68, %69, %cst_61 {dimension_numbers = #tpu.dot_dimension_numbers<[1], [0], [0], [1], [0, 0, 1, 1], [], []>} : vector<8x16xf32>, vector<16x16xf32>, vector<8x16xf32> -> vector<8x16xf32>
    %c0_62 = arith.constant 0 : index
    %c0_63 = arith.constant 0 : index
    %71 = vector.load %arg24[%c0_62, %c0_63] : memref<1x16xf32, #tpu.memory_space<vmem>>, vector<1x16xf32>
    %72 = vector.broadcast %71 : vector<1x16xf32> to vector<8x16xf32>
    %73 = arith.addf %70, %72 : vector<8x16xf32>
    %cst_64 = arith.constant 0.000000e+00 : f32
    %74 = vector.broadcast %cst_64 : f32 to vector<8x16xf32>
    %75 = arith.maximumf %73, %74 : vector<8x16xf32>
    %c0_65 = arith.constant 0 : index
    %c0_66 = arith.constant 0 : index
    %76 = vector.load %arg25[%c0_65, %c0_66] : memref<16x1xf32, #tpu.memory_space<vmem>>, vector<16x1xf32>
    %cst_67 = arith.constant dense<0.000000e+00> : vector<8x1xf32>
    %77 = tpu.matmul %75, %76, %cst_67 {dimension_numbers = #tpu.dot_dimension_numbers<[1], [0], [0], [1], [0, 0, 1, 1], [], []>} : vector<8x16xf32>, vector<16x1xf32>, vector<8x1xf32> -> vector<8x1xf32>
    %c0_68 = arith.constant 0 : index
    %c0_69 = arith.constant 0 : index
    %78 = vector.load %arg26[%c0_68, %c0_69] : memref<1x1xf32, #tpu.memory_space<vmem>>, vector<1x1xf32>
    %79 = vector.broadcast %78 : vector<1x1xf32> to vector<8x1xf32>
    %80 = arith.addf %77, %79 : vector<8x1xf32>
    %c0_70 = arith.constant 0 : index
    %c0_71 = arith.constant 0 : index
    %81 = vector.load %arg27[%c0_70, %c0_71] : memref<16x16xf32, #tpu.memory_space<vmem>>, vector<16x16xf32>
    %cst_72 = arith.constant dense<0.000000e+00> : vector<8x16xf32>
    %82 = tpu.matmul %33, %81, %cst_72 {dimension_numbers = #tpu.dot_dimension_numbers<[1], [0], [0], [1], [0, 0, 1, 1], [], []>} : vector<8x16xf32>, vector<16x16xf32>, vector<8x16xf32> -> vector<8x16xf32>
    %c0_73 = arith.constant 0 : index
    %c0_74 = arith.constant 0 : index
    %83 = vector.load %arg28[%c0_73, %c0_74] : memref<1x16xf32, #tpu.memory_space<vmem>>, vector<1x16xf32>
    %84 = vector.broadcast %83 : vector<1x16xf32> to vector<8x16xf32>
    %85 = arith.addf %82, %84 : vector<8x16xf32>
    %cst_75 = arith.constant 0.000000e+00 : f32
    %86 = vector.broadcast %cst_75 : f32 to vector<8x16xf32>
    %87 = arith.maximumf %85, %86 : vector<8x16xf32>
    %c0_76 = arith.constant 0 : index
    %c0_77 = arith.constant 0 : index
    %88 = vector.load %arg29[%c0_76, %c0_77] : memref<16x16xf32, #tpu.memory_space<vmem>>, vector<16x16xf32>
    %cst_78 = arith.constant dense<0.000000e+00> : vector<8x16xf32>
    %89 = tpu.matmul %87, %88, %cst_78 {dimension_numbers = #tpu.dot_dimension_numbers<[1], [0], [0], [1], [0, 0, 1, 1], [], []>} : vector<8x16xf32>, vector<16x16xf32>, vector<8x16xf32> -> vector<8x16xf32>
    %c0_79 = arith.constant 0 : index
    %c0_80 = arith.constant 0 : index
    %90 = vector.load %arg30[%c0_79, %c0_80] : memref<1x16xf32, #tpu.memory_space<vmem>>, vector<1x16xf32>
    %91 = vector.broadcast %90 : vector<1x16xf32> to vector<8x16xf32>
    %92 = arith.addf %89, %91 : vector<8x16xf32>
    %cst_81 = arith.constant 0.000000e+00 : f32
    %93 = vector.broadcast %cst_81 : f32 to vector<8x16xf32>
    %94 = arith.maximumf %92, %93 : vector<8x16xf32>
    %c0_82 = arith.constant 0 : index
    %c0_83 = arith.constant 0 : index
    %95 = vector.load %arg31[%c0_82, %c0_83] : memref<16x1xf32, #tpu.memory_space<vmem>>, vector<16x1xf32>
    %cst_84 = arith.constant dense<0.000000e+00> : vector<8x1xf32>
    %96 = tpu.matmul %94, %95, %cst_84 {dimension_numbers = #tpu.dot_dimension_numbers<[1], [0], [0], [1], [0, 0, 1, 1], [], []>} : vector<8x16xf32>, vector<16x1xf32>, vector<8x1xf32> -> vector<8x1xf32>
    %c0_85 = arith.constant 0 : index
    %c0_86 = arith.constant 0 : index
    %97 = vector.load %arg32[%c0_85, %c0_86] : memref<1x1xf32, #tpu.memory_space<vmem>>, vector<1x1xf32>
    %98 = vector.broadcast %97 : vector<1x1xf32> to vector<8x1xf32>
    %99 = arith.addf %96, %98 : vector<8x1xf32>
    %c0_87 = arith.constant 0 : index
    %c0_88 = arith.constant 0 : index
    %100 = vector.load %arg33[%c0_87, %c0_88] : memref<16x16xf32, #tpu.memory_space<vmem>>, vector<16x16xf32>
    %cst_89 = arith.constant dense<0.000000e+00> : vector<8x16xf32>
    %101 = tpu.matmul %61, %100, %cst_89 {dimension_numbers = #tpu.dot_dimension_numbers<[1], [0], [0], [1], [0, 0, 1, 1], [], []>} : vector<8x16xf32>, vector<16x16xf32>, vector<8x16xf32> -> vector<8x16xf32>
    %c0_90 = arith.constant 0 : index
    %c0_91 = arith.constant 0 : index
    %102 = vector.load %arg34[%c0_90, %c0_91] : memref<1x16xf32, #tpu.memory_space<vmem>>, vector<1x16xf32>
    %103 = vector.broadcast %102 : vector<1x16xf32> to vector<8x16xf32>
    %104 = arith.addf %101, %103 : vector<8x16xf32>
    %cst_92 = arith.constant 0.000000e+00 : f32
    %105 = vector.broadcast %cst_92 : f32 to vector<8x16xf32>
    %106 = arith.maximumf %104, %105 : vector<8x16xf32>
    %c0_93 = arith.constant 0 : index
    %c0_94 = arith.constant 0 : index
    %107 = vector.load %arg35[%c0_93, %c0_94] : memref<16x16xf32, #tpu.memory_space<vmem>>, vector<16x16xf32>
    %cst_95 = arith.constant dense<0.000000e+00> : vector<8x16xf32>
    %108 = tpu.matmul %106, %107, %cst_95 {dimension_numbers = #tpu.dot_dimension_numbers<[1], [0], [0], [1], [0, 0, 1, 1], [], []>} : vector<8x16xf32>, vector<16x16xf32>, vector<8x16xf32> -> vector<8x16xf32>
    %c0_96 = arith.constant 0 : index
    %c0_97 = arith.constant 0 : index
    %109 = vector.load %arg36[%c0_96, %c0_97] : memref<1x16xf32, #tpu.memory_space<vmem>>, vector<1x16xf32>
    %110 = vector.broadcast %109 : vector<1x16xf32> to vector<8x16xf32>
    %111 = arith.addf %108, %110 : vector<8x16xf32>
    %cst_98 = arith.constant 0.000000e+00 : f32
    %112 = vector.broadcast %cst_98 : f32 to vector<8x16xf32>
    %113 = arith.maximumf %111, %112 : vector<8x16xf32>
    %c0_99 = arith.constant 0 : index
    %c0_100 = arith.constant 0 : index
    %114 = vector.load %arg37[%c0_99, %c0_100] : memref<16x1xf32, #tpu.memory_space<vmem>>, vector<16x1xf32>
    %cst_101 = arith.constant dense<0.000000e+00> : vector<8x1xf32>
    %115 = tpu.matmul %113, %114, %cst_101 {dimension_numbers = #tpu.dot_dimension_numbers<[1], [0], [0], [1], [0, 0, 1, 1], [], []>} : vector<8x16xf32>, vector<16x1xf32>, vector<8x1xf32> -> vector<8x1xf32>
    %c0_102 = arith.constant 0 : index
    %c0_103 = arith.constant 0 : index
    %116 = vector.load %arg38[%c0_102, %c0_103] : memref<1x1xf32, #tpu.memory_space<vmem>>, vector<1x1xf32>
    %117 = vector.broadcast %116 : vector<1x1xf32> to vector<8x1xf32>
    %118 = arith.addf %115, %117 : vector<8x1xf32>
    %c0_104 = arith.constant 0 : index
    %c0_105 = arith.constant 0 : index
    %119 = vector.load %arg39[%c0_104, %c0_105] : memref<16x16xf32, #tpu.memory_space<vmem>>, vector<16x16xf32>
    %cst_106 = arith.constant dense<0.000000e+00> : vector<8x16xf32>
    %120 = tpu.matmul %75, %119, %cst_106 {dimension_numbers = #tpu.dot_dimension_numbers<[1], [0], [0], [1], [0, 0, 1, 1], [], []>} : vector<8x16xf32>, vector<16x16xf32>, vector<8x16xf32> -> vector<8x16xf32>
    %c0_107 = arith.constant 0 : index
    %c0_108 = arith.constant 0 : index
    %121 = vector.load %arg40[%c0_107, %c0_108] : memref<16x16xf32, #tpu.memory_space<vmem>>, vector<16x16xf32>
    %cst_109 = arith.constant dense<0.000000e+00> : vector<8x16xf32>
    %122 = tpu.matmul %94, %121, %cst_109 {dimension_numbers = #tpu.dot_dimension_numbers<[1], [0], [0], [1], [0, 0, 1, 1], [], []>} : vector<8x16xf32>, vector<16x16xf32>, vector<8x16xf32> -> vector<8x16xf32>
    %123 = arith.addf %120, %122 : vector<8x16xf32>
    %c0_110 = arith.constant 0 : index
    %c0_111 = arith.constant 0 : index
    %124 = vector.load %arg41[%c0_110, %c0_111] : memref<16x16xf32, #tpu.memory_space<vmem>>, vector<16x16xf32>
    %cst_112 = arith.constant dense<0.000000e+00> : vector<8x16xf32>
    %125 = tpu.matmul %113, %124, %cst_112 {dimension_numbers = #tpu.dot_dimension_numbers<[1], [0], [0], [1], [0, 0, 1, 1], [], []>} : vector<8x16xf32>, vector<16x16xf32>, vector<8x16xf32> -> vector<8x16xf32>
    %126 = arith.addf %123, %125 : vector<8x16xf32>
    %c0_113 = arith.constant 0 : index
    %c0_114 = arith.constant 0 : index
    %127 = vector.load %arg42[%c0_113, %c0_114] : memref<1x16xf32, #tpu.memory_space<vmem>>, vector<1x16xf32>
    %128 = vector.broadcast %127 : vector<1x16xf32> to vector<8x16xf32>
    %129 = arith.addf %126, %128 : vector<8x16xf32>
    %c0_115 = arith.constant 0 : index
    %c0_116 = arith.constant 0 : index
    %130 = vector.load %arg43[%c0_115, %c0_116] : memref<16x16xf32, #tpu.memory_space<vmem>>, vector<16x16xf32>
    %cst_117 = arith.constant dense<0.000000e+00> : vector<8x16xf32>
    %131 = tpu.matmul %129, %130, %cst_117 {dimension_numbers = #tpu.dot_dimension_numbers<[1], [0], [0], [1], [0, 0, 1, 1], [], []>} : vector<8x16xf32>, vector<16x16xf32>, vector<8x16xf32> -> vector<8x16xf32>
    %c0_118 = arith.constant 0 : index
    %c0_119 = arith.constant 0 : index
    %132 = vector.load %arg44[%c0_118, %c0_119] : memref<1x16xf32, #tpu.memory_space<vmem>>, vector<1x16xf32>
    %133 = vector.broadcast %132 : vector<1x16xf32> to vector<8x16xf32>
    %134 = arith.addf %131, %133 : vector<8x16xf32>
    %c0_120 = arith.constant 0 : index
    %c0_121 = arith.constant 0 : index
    %135 = vector.load %arg45[%c0_120, %c0_121] : memref<16x1xf32, #tpu.memory_space<vmem>>, vector<16x1xf32>
    %cst_122 = arith.constant dense<0.000000e+00> : vector<8x1xf32>
    %136 = tpu.matmul %134, %135, %cst_122 {dimension_numbers = #tpu.dot_dimension_numbers<[1], [0], [0], [1], [0, 0, 1, 1], [], []>} : vector<8x16xf32>, vector<16x1xf32>, vector<8x1xf32> -> vector<8x1xf32>
    %c0_123 = arith.constant 0 : index
    %c0_124 = arith.constant 0 : index
    %137 = vector.load %arg46[%c0_123, %c0_124] : memref<1x1xf32, #tpu.memory_space<vmem>>, vector<1x1xf32>
    %138 = vector.broadcast %137 : vector<1x1xf32> to vector<8x1xf32>
    %139 = arith.addf %136, %138 : vector<8x1xf32>
    %140 = arith.negf %139 : vector<8x1xf32>
    %141 = math.exp %140 : vector<8x1xf32>
    %cst_125 = arith.constant 1.000000e+00 : f32
    %142 = vector.broadcast %cst_125 : f32 to vector<8x1xf32>
    %143 = arith.addf %142, %141 : vector<8x1xf32>
    %144 = arith.divf %142, %143 : vector<8x1xf32>
    %cst_126 = arith.constant 2.000000e+00 : f32
    %145 = vector.broadcast %cst_126 : f32 to vector<8x1xf32>
    %146 = arith.mulf %144, %145 : vector<8x1xf32>
    %cst_127 = arith.constant 1.000000e+00 : f32
    %147 = vector.broadcast %cst_127 : f32 to vector<8x1xf32>
    %148 = arith.subf %146, %147 : vector<8x1xf32>
    %c0_128 = arith.constant 0 : index
    %c0_129 = arith.constant 0 : index
    %149 = vector.load %arg47[%c0_128, %c0_129] : memref<8x16xf32, #tpu.memory_space<vmem>>, vector<8x16xf32>
    tpu.vector_store %arg47[%c0_128, %c0_129], %75 {strides = array<i32>} : memref<8x16xf32, #tpu.memory_space<vmem>>, vector<8x16xf32>,
    %c0_130 = arith.constant 0 : index
    %c0_131 = arith.constant 0 : index
    %150 = vector.load %arg48[%c0_130, %c0_131] : memref<8x16xf32, #tpu.memory_space<vmem>>, vector<8x16xf32>
    tpu.vector_store %arg48[%c0_130, %c0_131], %94 {strides = array<i32>} : memref<8x16xf32, #tpu.memory_space<vmem>>, vector<8x16xf32>,
    %c0_132 = arith.constant 0 : index
    %c0_133 = arith.constant 0 : index
    %151 = vector.load %arg49[%c0_132, %c0_133] : memref<8x16xf32, #tpu.memory_space<vmem>>, vector<8x16xf32>
    tpu.vector_store %arg49[%c0_132, %c0_133], %113 {strides = array<i32>} : memref<8x16xf32, #tpu.memory_space<vmem>>, vector<8x16xf32>,
    %c0_134 = arith.constant 0 : index
    %c0_135 = arith.constant 0 : index
    %152 = vector.load %arg50[%c0_134, %c0_135] : memref<8x16xf32, #tpu.memory_space<vmem>>, vector<8x16xf32>
    tpu.vector_store %arg50[%c0_134, %c0_135], %134 {strides = array<i32>} : memref<8x16xf32, #tpu.memory_space<vmem>>, vector<8x16xf32>,
    %153 = tpu.concatenate %80, %99, %118, %148 in 1 : vector<8x1xf32>, vector<8x1xf32>, vector<8x1xf32>, vector<8x1xf32> -> vector<8x4xf32>
    %c0_136 = arith.constant 0 : index
    %c0_137 = arith.constant 0 : index
    %154 = vector.load %arg51[%c0_136, %c0_137] : memref<8x4xf32, #tpu.memory_space<vmem>>, vector<8x4xf32>
    tpu.vector_store %arg51[%c0_136, %c0_137], %153 {strides = array<i32>} : memref<8x4xf32, #tpu.memory_space<vmem>>, vector<8x4xf32>,
    return
  }
}

</mosaic_0001>

<llo_original>
// kernel: _lambda_.1
$region0: #{_lambda_.1}
  #allocation0 [shape = 'u32[]', space=smem, size = 0x4, offset = 0x4, fixed_abs, tag = 'smem constant byte address 0x4 - core index']
  #allocation1 [shape = 'u32[72,128]{1,0:T(1,128)}', space=vmem, size = 0x9000, scoped, tag = 'internal scratch']
  #allocation2 [shape = 'f32[1,1]{1,0:T(1,128)S(1)}', space=vmem, size = 0x200, scoped, tag = 'scoped memory for _lambda_.1']
  #allocation3 [shape = 'f32[1,1]{1,0:T(1,128)S(1)}', space=vmem, size = 0x200, scoped, tag = 'scoped memory for _lambda_.1']
  #allocation4 [shape = 'f32[1,1]{1,0:T(1,128)S(1)}', space=vmem, size = 0x200, scoped, tag = 'scoped memory for _lambda_.1']
  #allocation5 [shape = 'f32[1,1]{1,0:T(1,128)S(1)}', space=vmem, size = 0x200, scoped, tag = 'scoped memory for _lambda_.1']
  %s0 = inlined_call_operand.smem [shape: u32[52], index: -1, kind: input, shape index: {}]
  %s1 = sld [smem:[%s0]]
  %s2 = scalar_lea.smem %s0, 1
  %s3 = sld [smem:[%s2]]
  %s4 = scalar_lea.smem %s0, 2
  %s5 = sld [smem:[%s4]]
  %s6 = scalar_lea.smem %s0, 3
  %s7 = sld [smem:[%s6]]
  %s8 = scalar_lea.smem %s0, 4
  %s9 = sld [smem:[%s8]]
  %s10 = scalar_lea.smem %s0, 5
  %s11 = sld [smem:[%s10]]
  %s12 = scalar_lea.smem %s0, 6
  %s13 = sld [smem:[%s12]]
  %s14 = scalar_lea.smem %s0, 7
  %s15 = sld [smem:[%s14]]
  %s16 = scalar_lea.smem %s0, 8
  %s17 = sld [smem:[%s16]]
  %s18 = scalar_lea.smem %s0, 9
  %s19 = sld [smem:[%s18]]
  %s20 = scalar_lea.smem %s0, 10
  %s21 = sld [smem:[%s20]]
  %s22 = scalar_lea.smem %s0, 11
  %s23 = sld [smem:[%s22]]
  %s24 = scalar_lea.smem %s0, 12
  %s25 = sld [smem:[%s24]]
  %s26 = scalar_lea.smem %s0, 13
  %s27 = sld [smem:[%s26]]
  %s28 = scalar_lea.smem %s0, 14
  %s29 = sld [smem:[%s28]]
  %s30 = scalar_lea.smem %s0, 15
  %s31 = sld [smem:[%s30]]
  %s32 = scalar_lea.smem %s0, 16
  %s33 = sld [smem:[%s32]]
  %s34 = scalar_lea.smem %s0, 17
  %s35 = sld [smem:[%s34]]
  %s36 = scalar_lea.smem %s0, 18
  %s37 = sld [smem:[%s36]]
  %s38 = scalar_lea.smem %s0, 19
  %s39 = sld [smem:[%s38]]
  %s40 = scalar_lea.smem %s0, 20
  %s41 = sld [smem:[%s40]]
  %s42 = scalar_lea.smem %s0, 21
  %s43 = sld [smem:[%s42]]
  %s44 = scalar_lea.smem %s0, 22
  %s45 = sld [smem:[%s44]]
  %s46 = scalar_lea.smem %s0, 23
  %s47 = sld [smem:[%s46]]
  %s48 = scalar_lea.smem %s0, 24
  %s49 = sld [smem:[%s48]]
  %s50 = scalar_lea.smem %s0, 25
  %s51 = sld [smem:[%s50]]
  %s52 = scalar_lea.smem %s0, 26
  %s53 = sld [smem:[%s52]]
  %s54 = scalar_lea.smem %s0, 27
  %s55 = sld [smem:[%s54]]
  %s56 = scalar_lea.smem %s0, 28
  %s57 = sld [smem:[%s56]]
  %s58 = scalar_lea.smem %s0, 29
  %s59 = sld [smem:[%s58]]
  %s60 = scalar_lea.smem %s0, 30
  %s61 = sld [smem:[%s60]]
  %s62 = scalar_lea.smem %s0, 31
  %s63 = sld [smem:[%s62]]
  %s64 = scalar_lea.smem %s0, 32
  %s65 = sld [smem:[%s64]]
  %s66 = scalar_lea.smem %s0, 33
  %s67 = sld [smem:[%s66]]
  %s68 = scalar_lea.smem %s0, 34
  %s69 = sld [smem:[%s68]]
  %s70 = scalar_lea.smem %s0, 35
  %s71 = sld [smem:[%s70]]
  %s72 = scalar_lea.smem %s0, 36
  %s73 = sld [smem:[%s72]]
  %s74 = scalar_lea.smem %s0, 37
  %s75 = sld [smem:[%s74]]
  %s76 = scalar_lea.smem %s0, 38
  %s77 = sld [smem:[%s76]]
  %s78 = scalar_lea.smem %s0, 39
  %s79 = sld [smem:[%s78]]
  %s80 = scalar_lea.smem %s0, 40
  %s81 = sld [smem:[%s80]]
  %s82 = scalar_lea.smem %s0, 41
  %s83 = sld [smem:[%s82]]
  %s84 = scalar_lea.smem %s0, 42
  %s85 = sld [smem:[%s84]]
  %s86 = scalar_lea.smem %s0, 43
  %s87 = sld [smem:[%s86]]
  %s88 = scalar_lea.smem %s0, 44
  %s89 = sld [smem:[%s88]]
  %s90 = scalar_lea.smem %s0, 45
  %s91 = sld [smem:[%s90]]
  %s92 = scalar_lea.smem %s0, 46
  %s93 = sld [smem:[%s92]]
  %s94 = scalar_lea.smem %s0, 47
  %s95 = sld [smem:[%s94]]
  %s96 = scalar_lea.smem %s0, 48
  %s97 = sld [smem:[%s96]]
  %s98 = scalar_lea.smem %s0, 49
  %s99 = sld [smem:[%s98]]
  %s100 = scalar_lea.smem %s0, 50
  %s101 = sld [smem:[%s100]]
  %s102 = scalar_lea.smem %s0, 51
  %s103 = sld [smem:[%s102]]
  %104 = xla_tuple %s95, %s97, %s99, %s101, %s103
  %s105 = sld [smem:[#allocation0]]
  $region234: #{_lambda_.1} parent=0
    _
  %s107 = ssub.s32 1, %s105
  %s108 = scalar_select 0, %s107, %s105
  %v109 = vstv %s53
  %110 = vst [vmem:[#allocation2] sm:$0x1] %v109
  %v111 = vstv %s65
  %112 = vst [vmem:[#allocation3] sm:$0x1] %v111
  %v113 = vstv %s77
  %114 = vst [vmem:[#allocation4] sm:$0x1] %v113
  %v115 = vstv %s93
  %116 = vst [vmem:[#allocation5] sm:$0x1] %v115
  $region1: #{_lambda_.1} parent=0
    #allocation6 [shape = 'u8[512]{0}', space=vmem, size = 0x400, scoped, tag = 'input window, operand 44, single buffered']
    #allocation7 [shape = 's32[1]{0}', space=sflag, size = 0x4, scoped, tag = 'scoped memory for _lambda_.1']
    #allocation8 [shape = 's32[1]{0}', space=sflag, size = 0x4, scoped, tag = 'scoped memory for _lambda_.1']
    #allocation9 [shape = 'u8[4096]{0}', space=vmem, size = 0x1000, scoped, tag = 'output window, operand 0, single buffered']
    #allocation10 [shape = 'u8[4096]{0}', space=vmem, size = 0x1000, scoped, tag = 'output window, operand 1, single buffered']
    #allocation11 [shape = 's32[1]{0}', space=sflag, size = 0x4, scoped, tag = 'scoped memory for _lambda_.1']
    #allocation12 [shape = 'u8[4096]{0}', space=vmem, size = 0x1000, scoped, tag = 'output window, operand 2, single buffered']
    #allocation13 [shape = 'u8[4096]{0}', space=vmem, size = 0x1000, scoped, tag = 'output window, operand 3, single buffered']
    #allocation14 [shape = 's32[1]{0}', space=sflag, size = 0x4, scoped, tag = 'scoped memory for _lambda_.1']
    %117 = vsyncpa [#allocation7], 0
    %118 = vsyncpa [#allocation8], 0
    %119 = vsyncpa [#allocation11], 0
    %120 = vsyncpa [#allocation14], 0
    // Predicated region
    $region2: #{_lambda_.1} parent=1 // pred_check
      _
    $region3: #{_lambda_.1} parent=1 // pred_check_branch
      %122 = sbr.rel (0) target = $region5
    $region4: #{_lambda_.1} parent=1 // pred_region
      _
    $region5: #{_lambda_.1} parent=1 // pred_fallthru
      _
    // Predicated region
    $region6: #{_lambda_.1} parent=1 // pred_check
      _
    $region7: #{_lambda_.1} parent=1 // pred_check_branch
      %124 = sbr.rel (0) target = $region9
    $region8: #{_lambda_.1} parent=1 // pred_region
      _
    $region9: #{_lambda_.1} parent=1 // pred_fallthru
      _
    // Predicated region
    $region10: #{_lambda_.1} parent=1 // pred_check
      _
    $region11: #{_lambda_.1} parent=1 // pred_check_branch
      %126 = sbr.rel (0) target = $region13
    $region12: #{_lambda_.1} parent=1 // pred_region
      _
    $region13: #{_lambda_.1} parent=1 // pred_fallthru
      _
    // Predicated region
    $region14: #{_lambda_.1} parent=1 // pred_check
      _
    $region15: #{_lambda_.1} parent=1 // pred_check_branch
      %128 = sbr.rel (0) target = $region17
    $region16: #{_lambda_.1} parent=1 // pred_region
      _
    $region17: #{_lambda_.1} parent=1 // pred_fallthru
      _
    // Predicated region
    $region18: #{_lambda_.1} parent=1 // pred_check
      _
    $region19: #{_lambda_.1} parent=1 // pred_check_branch
      %130 = sbr.rel (0) target = $region21
    $region20: #{_lambda_.1} parent=1 // pred_region
      _
    $region21: #{_lambda_.1} parent=1 // pred_fallthru
      _
    // Predicated region
    $region22: #{_lambda_.1} parent=1 // pred_check
      _
    $region23: #{_lambda_.1} parent=1 // pred_check_branch
      %132 = sbr.rel (0) target = $region25
    $region24: #{_lambda_.1} parent=1 // pred_region
      _
    $region25: #{_lambda_.1} parent=1 // pred_fallthru
      _
    // Predicated region
    $region26: #{_lambda_.1} parent=1 // pred_check
      _
    $region27: #{_lambda_.1} parent=1 // pred_check_branch
      %134 = sbr.rel (0) target = $region29
    $region28: #{_lambda_.1} parent=1 // pred_region
      _
    $region29: #{_lambda_.1} parent=1 // pred_fallthru
      _
    // Predicated region
    $region30: #{_lambda_.1} parent=1 // pred_check
      _
    $region31: #{_lambda_.1} parent=1 // pred_check_branch
      %136 = sbr.rel (0) target = $region33
    $region32: #{_lambda_.1} parent=1 // pred_region
      _
    $region33: #{_lambda_.1} parent=1 // pred_fallthru
      _
    // Predicated region
    $region34: #{_lambda_.1} parent=1 // pred_check
      _
    $region35: #{_lambda_.1} parent=1 // pred_check_branch
      %138 = sbr.rel (0) target = $region37
    $region36: #{_lambda_.1} parent=1 // pred_region
      _
    $region37: #{_lambda_.1} parent=1 // pred_fallthru
      _
    // Predicated region
    $region38: #{_lambda_.1} parent=1 // pred_check
      _
    $region39: #{_lambda_.1} parent=1 // pred_check_branch
      %140 = sbr.rel (0) target = $region41
    $region40: #{_lambda_.1} parent=1 // pred_region
      _
    $region41: #{_lambda_.1} parent=1 // pred_fallthru
      _
    // Predicated region
    $region42: #{_lambda_.1} parent=1 // pred_check
      _
    $region43: #{_lambda_.1} parent=1 // pred_check_branch
      %142 = sbr.rel (0) target = $region45
    $region44: #{_lambda_.1} parent=1 // pred_region
      _
    $region45: #{_lambda_.1} parent=1 // pred_fallthru
      _
    // Predicated region
    $region46: #{_lambda_.1} parent=1 // pred_check
      _
    $region47: #{_lambda_.1} parent=1 // pred_check_branch
      %144 = sbr.rel (0) target = $region49
    $region48: #{_lambda_.1} parent=1 // pred_region
      _
    $region49: #{_lambda_.1} parent=1 // pred_fallthru
      _
    // Predicated region
    $region50: #{_lambda_.1} parent=1 // pred_check
      _
    $region51: #{_lambda_.1} parent=1 // pred_check_branch
      %146 = sbr.rel (0) target = $region53
    $region52: #{_lambda_.1} parent=1 // pred_region
      _
    $region53: #{_lambda_.1} parent=1 // pred_fallthru
      _
    // Predicated region
    $region54: #{_lambda_.1} parent=1 // pred_check
      _
    $region55: #{_lambda_.1} parent=1 // pred_check_branch
      %148 = sbr.rel (0) target = $region57
    $region56: #{_lambda_.1} parent=1 // pred_region
      _
    $region57: #{_lambda_.1} parent=1 // pred_fallthru
      _
    // Predicated region
    $region58: #{_lambda_.1} parent=1 // pred_check
      _
    $region59: #{_lambda_.1} parent=1 // pred_check_branch
      %150 = sbr.rel (0) target = $region61
    $region60: #{_lambda_.1} parent=1 // pred_region
      _
    $region61: #{_lambda_.1} parent=1 // pred_fallthru
      _
    // Predicated region
    $region62: #{_lambda_.1} parent=1 // pred_check
      _
    $region63: #{_lambda_.1} parent=1 // pred_check_branch
      %152 = sbr.rel (0) target = $region65
    $region64: #{_lambda_.1} parent=1 // pred_region
      _
    $region65: #{_lambda_.1} parent=1 // pred_fallthru
      _
    // Predicated region
    $region66: #{_lambda_.1} parent=1 // pred_check
      _
    $region67: #{_lambda_.1} parent=1 // pred_check_branch
      %154 = sbr.rel (0) target = $region69
    $region68: #{_lambda_.1} parent=1 // pred_region
      _
    $region69: #{_lambda_.1} parent=1 // pred_fallthru
      _
    // Predicated region
    $region70: #{_lambda_.1} parent=1 // pred_check
      _
    $region71: #{_lambda_.1} parent=1 // pred_check_branch
      %156 = sbr.rel (0) target = $region73
    $region72: #{_lambda_.1} parent=1 // pred_region
      _
    $region73: #{_lambda_.1} parent=1 // pred_fallthru
      _
    // Predicated region
    $region74: #{_lambda_.1} parent=1 // pred_check
      _
    $region75: #{_lambda_.1} parent=1 // pred_check_branch
      %158 = sbr.rel (0) target = $region77
    $region76: #{_lambda_.1} parent=1 // pred_region
      _
    $region77: #{_lambda_.1} parent=1 // pred_fallthru
      _
    // Predicated region
    $region78: #{_lambda_.1} parent=1 // pred_check
      _
    $region79: #{_lambda_.1} parent=1 // pred_check_branch
      %160 = sbr.rel (0) target = $region81
    $region80: #{_lambda_.1} parent=1 // pred_region
      _
    $region81: #{_lambda_.1} parent=1 // pred_fallthru
      _
    // Predicated region
    $region82: #{_lambda_.1} parent=1 // pred_check
      _
    $region83: #{_lambda_.1} parent=1 // pred_check_branch
      %162 = sbr.rel (0) target = $region85
    $region84: #{_lambda_.1} parent=1 // pred_region
      _
    $region85: #{_lambda_.1} parent=1 // pred_fallthru
      _
    // Predicated region
    $region86: #{_lambda_.1} parent=1 // pred_check
      _
    $region87: #{_lambda_.1} parent=1 // pred_check_branch
      %164 = sbr.rel (0) target = $region89
    $region88: #{_lambda_.1} parent=1 // pred_region
      _
    $region89: #{_lambda_.1} parent=1 // pred_fallthru
      _
    // Predicated region
    $region90: #{_lambda_.1} parent=1 // pred_check
      _
    $region91: #{_lambda_.1} parent=1 // pred_check_branch
      %166 = sbr.rel (0) target = $region93
    $region92: #{_lambda_.1} parent=1 // pred_region
      _
    $region93: #{_lambda_.1} parent=1 // pred_fallthru
      _
    // Predicated region
    $region94: #{_lambda_.1} parent=1 // pred_check
      _
    $region95: #{_lambda_.1} parent=1 // pred_check_branch
      %168 = sbr.rel (0) target = $region97
    $region96: #{_lambda_.1} parent=1 // pred_region
      _
    $region97: #{_lambda_.1} parent=1 // pred_fallthru
      _
    // Predicated region
    $region98: #{_lambda_.1} parent=1 // pred_check
      _
    $region99: #{_lambda_.1} parent=1 // pred_check_branch
      %170 = sbr.rel (0) target = $region101
    $region100: #{_lambda_.1} parent=1 // pred_region
      _
    $region101: #{_lambda_.1} parent=1 // pred_fallthru
      _
    // Predicated region
    $region102: #{_lambda_.1} parent=1 // pred_check
      _
    $region103: #{_lambda_.1} parent=1 // pred_check_branch
      %172 = sbr.rel (0) target = $region105
    $region104: #{_lambda_.1} parent=1 // pred_region
      _
    $region105: #{_lambda_.1} parent=1 // pred_fallthru
      _
    // Predicated region
    $region106: #{_lambda_.1} parent=1 // pred_check
      _
    $region107: #{_lambda_.1} parent=1 // pred_check_branch
      %174 = sbr.rel (0) target = $region109
    $region108: #{_lambda_.1} parent=1 // pred_region
      _
    $region109: #{_lambda_.1} parent=1 // pred_fallthru
      _
    // Predicated region
    $region110: #{_lambda_.1} parent=1 // pred_check
      _
    $region111: #{_lambda_.1} parent=1 // pred_check_branch
      %176 = sbr.rel (0) target = $region113
    $region112: #{_lambda_.1} parent=1 // pred_region
      _
    $region113: #{_lambda_.1} parent=1 // pred_fallthru
      _
    // Predicated region
    $region114: #{_lambda_.1} parent=1 // pred_check
      _
    $region115: #{_lambda_.1} parent=1 // pred_check_branch
      %178 = sbr.rel (0) target = $region117
    $region116: #{_lambda_.1} parent=1 // pred_region
      _
    $region117: #{_lambda_.1} parent=1 // pred_fallthru
      _
    // Predicated region
    $region118: #{_lambda_.1} parent=1 // pred_check
      _
    $region119: #{_lambda_.1} parent=1 // pred_check_branch
      %180 = sbr.rel (0) target = $region121
    $region120: #{_lambda_.1} parent=1 // pred_region
      _
    $region121: #{_lambda_.1} parent=1 // pred_fallthru
      _
    // Predicated region
    $region122: #{_lambda_.1} parent=1 // pred_check
      _
    $region123: #{_lambda_.1} parent=1 // pred_check_branch
      %182 = sbr.rel (0) target = $region125
    $region124: #{_lambda_.1} parent=1 // pred_region
      _
    $region125: #{_lambda_.1} parent=1 // pred_fallthru
      _
    // Predicated region
    $region126: #{_lambda_.1} parent=1 // pred_check
      _
    $region127: #{_lambda_.1} parent=1 // pred_check_branch
      %184 = sbr.rel (0) target = $region129
    $region128: #{_lambda_.1} parent=1 // pred_region
      _
    $region129: #{_lambda_.1} parent=1 // pred_fallthru
      _
    // Predicated region
    $region130: #{_lambda_.1} parent=1 // pred_check
      _
    $region131: #{_lambda_.1} parent=1 // pred_check_branch
      %186 = sbr.rel (0) target = $region133
    $region132: #{_lambda_.1} parent=1 // pred_region
      _
    $region133: #{_lambda_.1} parent=1 // pred_fallthru
      _
    // Predicated region
    $region134: #{_lambda_.1} parent=1 // pred_check
      _
    $region135: #{_lambda_.1} parent=1 // pred_check_branch
      %188 = sbr.rel (0) target = $region137
    $region136: #{_lambda_.1} parent=1 // pred_region
      _
    $region137: #{_lambda_.1} parent=1 // pred_fallthru
      _
    // Predicated region
    $region138: #{_lambda_.1} parent=1 // pred_check
      _
    $region139: #{_lambda_.1} parent=1 // pred_check_branch
      %190 = sbr.rel (0) target = $region141
    $region140: #{_lambda_.1} parent=1 // pred_region
      _
    $region141: #{_lambda_.1} parent=1 // pred_fallthru
      _
    // Predicated region
    $region142: #{_lambda_.1} parent=1 // pred_check
      _
    $region143: #{_lambda_.1} parent=1 // pred_check_branch
      %192 = sbr.rel (0) target = $region145
    $region144: #{_lambda_.1} parent=1 // pred_region
      _
    $region145: #{_lambda_.1} parent=1 // pred_fallthru
      _
    // Predicated region
    $region146: #{_lambda_.1} parent=1 // pred_check
      _
    $region147: #{_lambda_.1} parent=1 // pred_check_branch
      %194 = sbr.rel (0) target = $region149
    $region148: #{_lambda_.1} parent=1 // pred_region
      _
    $region149: #{_lambda_.1} parent=1 // pred_fallthru
      _
    // Predicated region
    $region150: #{_lambda_.1} parent=1 // pred_check
      _
    $region151: #{_lambda_.1} parent=1 // pred_check_branch
      %196 = sbr.rel (0) target = $region153
    $region152: #{_lambda_.1} parent=1 // pred_region
      _
    $region153: #{_lambda_.1} parent=1 // pred_fallthru
      _
    // Predicated region
    $region154: #{_lambda_.1} parent=1 // pred_check
      _
    $region155: #{_lambda_.1} parent=1 // pred_check_branch
      %198 = sbr.rel (0) target = $region157
    $region156: #{_lambda_.1} parent=1 // pred_region
      _
    $region157: #{_lambda_.1} parent=1 // pred_fallthru
      _
    // Predicated region
    $region158: #{_lambda_.1} parent=1 // pred_check
      _
    $region159: #{_lambda_.1} parent=1 // pred_check_branch
      %200 = sbr.rel (0) target = $region161
    $region160: #{_lambda_.1} parent=1 // pred_region
      _
    $region161: #{_lambda_.1} parent=1 // pred_fallthru
      _
    // Predicated region
    $region162: #{_lambda_.1} parent=1 // pred_check
      _
    $region163: #{_lambda_.1} parent=1 // pred_check_branch
      %202 = sbr.rel (0) target = $region165
    $region164: #{_lambda_.1} parent=1 // pred_region
      _
    $region165: #{_lambda_.1} parent=1 // pred_fallthru
      _
    // Predicated region
    $region166: #{_lambda_.1} parent=1 // pred_check
      _
    $region167: #{_lambda_.1} parent=1 // pred_check_branch
      %204 = sbr.rel (0) target = $region169
    $region168: #{_lambda_.1} parent=1 // pred_region
      _
    $region169: #{_lambda_.1} parent=1 // pred_fallthru
      _
    // Predicated region
    $region170: #{_lambda_.1} parent=1 // pred_check
      _
    $region171: #{_lambda_.1} parent=1 // pred_check_branch
      %206 = sbr.rel (0) target = $region173
    $region172: #{_lambda_.1} parent=1 // pred_region
      _
    $region173: #{_lambda_.1} parent=1 // pred_fallthru
      _
    // Predicated region
    $region174: #{_lambda_.1} parent=1 // pred_check
      _
    $region175: #{_lambda_.1} parent=1 // pred_check_branch
      %208 = sbr.rel (0) target = $region177
    $region176: #{_lambda_.1} parent=1 // pred_region
      _
    $region177: #{_lambda_.1} parent=1 // pred_fallthru
      _
    // Predicated region
    $region178: #{_lambda_.1} parent=1 // pred_check
      _
    $region179: #{_lambda_.1} parent=1 // pred_check_branch
      %210 = sbr.rel (0) target = $region181
    $region180: #{_lambda_.1} parent=1 // pred_region
      %212 = vsyncadd [#allocation7], 0
      %s214 = sshll.u32 %s89, 4
      %s215 = int_to_ptr.hbm [resolvable:$true] %s214
      %s216 = sshll.u32 [#allocation6], 4
      %s217 = int_to_ptr.vmem [resolvable:$true] %s216
      %219 = dma.hbm_to_vmem [thread:$0]  %s215, 16, %s217, [#allocation7]
    $region181: #{_lambda_.1} parent=1 // pred_fallthru
      _
    // Predicated region
    $region182: #{_lambda_.1} parent=1 // pred_check
      _
    $region183: #{_lambda_.1} parent=1 // pred_check_branch
      %221 = sbr.rel (0) target = $region185
    $region184: #{_lambda_.1} parent=1 // pred_region
      _
    $region185: #{_lambda_.1} parent=1 // pred_fallthru
      _
    // Predicated region
    $region186: #{_lambda_.1} parent=1 // pred_check
      _
    $region187: #{_lambda_.1} parent=1 // pred_check_branch
      %223 = sbr.rel (0) target = $region189
    $region188: #{_lambda_.1} parent=1 // pred_region
      _
    $region189: #{_lambda_.1} parent=1 // pred_fallthru
      _
    // Predicated region
    $region190: #{_lambda_.1} parent=1 // pred_check
      _
    $region191: #{_lambda_.1} parent=1 // pred_check_branch
      %225 = sbr.rel (0) target = $region193
    $region192: #{_lambda_.1} parent=1 // pred_region
      %227 = dma.done [#allocation7], 16
    $region193: #{_lambda_.1} parent=1 // pred_fallthru
      _
    %v228 = vld [vmem:[%s1] sm:$0xff]
    %v229 = vld [vmem:[%s7] sm:$0xff]
    %v230 = vld [vmem:[%s7 + $0x8] sm:$0xff]
    %v231 = vld [vmem:[%s7 + $0x10] sm:$0xff]
    %v232 = vld [vmem:[%s7 + $0x18] sm:$0xff]
    %v233 = vld [vmem:[%s9] sm:$0x1]
    %v235 = vperm.slane %v233, 0
    %vm237 = vcmask 261120
    %v239 = vsel %vm237, %v228, 0
    %241 = vmatpush.msra.mxu0 0.0
    %242 = vmatpush.msra.mxu0 0.0
    %243 = vmatpush.msra.mxu0 0.0
    %244 = vmatpush.msra.mxu0 0.0
    %245 = vmatpush.msra.mxu0 0.0
    %246 = vmatpush.msra.mxu0 0.0
    %247 = vmatpush.msra.mxu0 0.0
    %248 = vmatpush.msra.mxu0 0.0
    %249 = vmatpush.msra.mxu0 0.0
    %250 = vmatpush.msra.mxu0 0.0
    %251 = vmatpush.msra.mxu0 0.0
    %252 = vmatpush.msra.mxu0 0.0
    %253 = vmatpush.msra.mxu0 %v232
    %254 = vmatpush.msra.mxu0 %v231
    %255 = vmatpush.msra.mxu0 %v230
    %256 = vmatpush.msra.mxu0 %v229
    %257 = vmatmul.f32.gmra.mxu0 %v239
    %v258 = vpop.f32.mrf.mxu0
    %v259 = vadd.f32 %v235, %v258
    %260 = vdwg.mxu0
    %v261 = vld [vmem:[%s3] sm:$0xff]
    %v262 = vld [vmem:[%s11] sm:$0x1]
    %v264 = vperm.slane %v262, 0
    %v266 = vmul.f32 %v261, %v264
    %v267 = vld [vmem:[%s13] sm:$0x1]
    %v269 = vperm.slane %v267, 0
    %v271 = vadd.f32 %v266, %v269
    %v272 = vld [vmem:[%s15] sm:$0xff]
    %v273 = vld [vmem:[%s15 + $0x8] sm:$0xff]
    %v274 = vld [vmem:[%s17] sm:$0x1]
    %v276 = vperm.slane %v274, 0
    %vm278 = vcmask 130048
    %v280 = vsel %vm278, %v271, 0
    %282 = vmatpush.msra.mxu0 0.0
    %283 = vmatpush.msra.mxu0 0.0
    %284 = vmatpush.msra.mxu0 0.0
    %285 = vmatpush.msra.mxu0 0.0
    %286 = vmatpush.msra.mxu0 0.0
    %287 = vmatpush.msra.mxu0 0.0
    %288 = vmatpush.msra.mxu0 0.0
    %289 = vmatpush.msra.mxu0 0.0
    %290 = vmatpush.msra.mxu0 0.0
    %291 = vmatpush.msra.mxu0 0.0
    %292 = vmatpush.msra.mxu0 0.0
    %293 = vmatpush.msra.mxu0 0.0
    %294 = vmatpush.msra.mxu0 0.0
    %295 = vmatpush.msra.mxu0 0.0
    %296 = vmatpush.msra.mxu0 %v273
    %297 = vmatpush.msra.mxu0 %v272
    %298 = vmatmul.f32.gmra.mxu0 %v280
    %v299 = vpop.f32.mrf.mxu0
    %v300 = vadd.f32 %v276, %v299
    %301 = vdwg.mxu0
    %v302 = vmax.f32 %v300, 0.0
    %v303 = vld [vmem:[%s19] sm:$0xff]
    %v304 = vld [vmem:[%s19 + $0x8] sm:$0xff]
    %v305 = vld [vmem:[%s21] sm:$0x1]
    %v307 = vperm.slane %v305, 0
    %v310 = vsel %vm278, %v302, 0
    %312 = vmatpush.msra.mxu0 0.0
    %313 = vmatpush.msra.mxu0 0.0
    %314 = vmatpush.msra.mxu0 0.0
    %315 = vmatpush.msra.mxu0 0.0
    %316 = vmatpush.msra.mxu0 0.0
    %317 = vmatpush.msra.mxu0 0.0
    %318 = vmatpush.msra.mxu0 0.0
    %319 = vmatpush.msra.mxu0 0.0
    %320 = vmatpush.msra.mxu0 0.0
    %321 = vmatpush.msra.mxu0 0.0
    %322 = vmatpush.msra.mxu0 0.0
    %323 = vmatpush.msra.mxu0 0.0
    %324 = vmatpush.msra.mxu0 0.0
    %325 = vmatpush.msra.mxu0 0.0
    %326 = vmatpush.msra.mxu0 %v304
    %327 = vmatpush.msra.mxu0 %v303
    %328 = vmatmul.f32.gmra.mxu0 %v310
    %v329 = vpop.f32.mrf.mxu0
    %v330 = vadd.f32 %v307, %v329
    %331 = vdwg.mxu0
    %v332 = vmax.f32 %v330, 0.0
    %v333 = vld [vmem:[%s23] sm:$0xff]
    %v334 = vld [vmem:[%s23 + $0x8] sm:$0xff]
    %v335 = vld [vmem:[%s25] sm:$0x1]
    %v337 = vperm.slane %v335, 0
    %v340 = vsel %vm278, %v332, 0
    %342 = vmatpush.msra.mxu0 0.0
    %343 = vmatpush.msra.mxu0 0.0
    %344 = vmatpush.msra.mxu0 0.0
    %345 = vmatpush.msra.mxu0 0.0
    %346 = vmatpush.msra.mxu0 0.0
    %347 = vmatpush.msra.mxu0 0.0
    %348 = vmatpush.msra.mxu0 0.0
    %349 = vmatpush.msra.mxu0 0.0
    %350 = vmatpush.msra.mxu0 0.0
    %351 = vmatpush.msra.mxu0 0.0
    %352 = vmatpush.msra.mxu0 0.0
    %353 = vmatpush.msra.mxu0 0.0
    %354 = vmatpush.msra.mxu0 0.0
    %355 = vmatpush.msra.mxu0 0.0
    %356 = vmatpush.msra.mxu0 %v334
    %357 = vmatpush.msra.mxu0 %v333
    %358 = vmatmul.f32.gmra.mxu0 %v340
    %v359 = vpop.f32.mrf.mxu0
    %v360 = vadd.f32 %v337, %v359
    %361 = vdwg.mxu0
    %v362 = vmax.f32 %v360, 0.0
    %v363 = vld [vmem:[%s5] sm:$0xff]
    %v364 = vld [vmem:[%s27] sm:$0x1]
    %v366 = vperm.slane %v364, 0
    %v368 = vmul.f32 %v363, %v366
    %v369 = vld [vmem:[%s29] sm:$0x1]
    %v371 = vperm.slane %v369, 0
    %v373 = vadd.f32 %v368, %v371
    %v374 = vld [vmem:[%s31] sm:$0xff]
    %v375 = vld [vmem:[%s31 + $0x8] sm:$0xff]
    %v376 = vld [vmem:[%s31 + $0x10] sm:$0xff]
    %v377 = vld [vmem:[%s33] sm:$0x1]
    %v379 = vperm.slane %v377, 0
    %vm381 = vcmask 195584
    %v383 = vsel %vm381, %v373, 0
    %385 = vmatpush.msra.mxu0 0.0
    %386 = vmatpush.msra.mxu0 0.0
    %387 = vmatpush.msra.mxu0 0.0
    %388 = vmatpush.msra.mxu0 0.0
    %389 = vmatpush.msra.mxu0 0.0
    %390 = vmatpush.msra.mxu0 0.0
    %391 = vmatpush.msra.mxu0 0.0
    %392 = vmatpush.msra.mxu0 0.0
    %393 = vmatpush.msra.mxu0 0.0
    %394 = vmatpush.msra.mxu0 0.0
    %395 = vmatpush.msra.mxu0 0.0
    %396 = vmatpush.msra.mxu0 0.0
    %397 = vmatpush.msra.mxu0 0.0
    %398 = vmatpush.msra.mxu0 %v376
    %399 = vmatpush.msra.mxu0 %v375
    %400 = vmatpush.msra.mxu0 %v374
    %401 = vmatmul.f32.gmra.mxu0 %v383
    %v402 = vpop.f32.mrf.mxu0
    %v403 = vadd.f32 %v379, %v402
    %404 = vdwg.mxu0
    %v405 = vmax.f32 %v403, 0.0
    %v406 = vld [vmem:[%s35] sm:$0xff]
    %v407 = vld [vmem:[%s35 + $0x8] sm:$0xff]
    %v408 = vld [vmem:[%s37] sm:$0x1]
    %v410 = vperm.slane %v408, 0
    %v413 = vsel %vm278, %v405, 0
    %415 = vmatpush.msra.mxu0 0.0
    %416 = vmatpush.msra.mxu0 0.0
    %417 = vmatpush.msra.mxu0 0.0
    %418 = vmatpush.msra.mxu0 0.0
    %419 = vmatpush.msra.mxu0 0.0
    %420 = vmatpush.msra.mxu0 0.0
    %421 = vmatpush.msra.mxu0 0.0
    %422 = vmatpush.msra.mxu0 0.0
    %423 = vmatpush.msra.mxu0 0.0
    %424 = vmatpush.msra.mxu0 0.0
    %425 = vmatpush.msra.mxu0 0.0
    %426 = vmatpush.msra.mxu0 0.0
    %427 = vmatpush.msra.mxu0 0.0
    %428 = vmatpush.msra.mxu0 0.0
    %429 = vmatpush.msra.mxu0 %v407
    %430 = vmatpush.msra.mxu0 %v406
    %431 = vmatmul.f32.gmra.mxu0 %v413
    %v432 = vpop.f32.mrf.mxu0
    %v433 = vadd.f32 %v410, %v432
    %434 = vdwg.mxu0
    %v435 = vmax.f32 %v433, 0.0
    %v436 = vld [vmem:[%s39] sm:$0xff]
    %v437 = vld [vmem:[%s39 + $0x8] sm:$0xff]
    %v438 = vld [vmem:[%s41] sm:$0x1]
    %v440 = vperm.slane %v438, 0
    %v443 = vsel %vm278, %v435, 0
    %445 = vmatpush.msra.mxu0 0.0
    %446 = vmatpush.msra.mxu0 0.0
    %447 = vmatpush.msra.mxu0 0.0
    %448 = vmatpush.msra.mxu0 0.0
    %449 = vmatpush.msra.mxu0 0.0
    %450 = vmatpush.msra.mxu0 0.0
    %451 = vmatpush.msra.mxu0 0.0
    %452 = vmatpush.msra.mxu0 0.0
    %453 = vmatpush.msra.mxu0 0.0
    %454 = vmatpush.msra.mxu0 0.0
    %455 = vmatpush.msra.mxu0 0.0
    %456 = vmatpush.msra.mxu0 0.0
    %457 = vmatpush.msra.mxu0 0.0
    %458 = vmatpush.msra.mxu0 0.0
    %459 = vmatpush.msra.mxu0 %v437
    %460 = vmatpush.msra.mxu0 %v436
    %461 = vmatmul.f32.gmra.mxu0 %v443
    %v462 = vpop.f32.mrf.mxu0
    %v463 = vadd.f32 %v440, %v462
    %464 = vdwg.mxu0
    %v465 = vmax.f32 %v463, 0.0
    %v466 = vld [vmem:[%s43] sm:$0xff]
    %v467 = vld [vmem:[%s43 + $0x8] sm:$0xff]
    %v468 = vld [vmem:[%s43 + $0x10] sm:$0xff]
    %v469 = vld [vmem:[%s43 + $0x18] sm:$0xff]
    %v470 = vld [vmem:[%s45] sm:$0x1]
    %v472 = vperm.slane %v470, 0
    %v475 = vsel %vm237, %v259, 0
    %477 = vmatpush.msra.mxu0 0.0
    %478 = vmatpush.msra.mxu0 0.0
    %479 = vmatpush.msra.mxu0 0.0
    %480 = vmatpush.msra.mxu0 0.0
    %481 = vmatpush.msra.mxu0 0.0
    %482 = vmatpush.msra.mxu0 0.0
    %483 = vmatpush.msra.mxu0 0.0
    %484 = vmatpush.msra.mxu0 0.0
    %485 = vmatpush.msra.mxu0 0.0
    %486 = vmatpush.msra.mxu0 0.0
    %487 = vmatpush.msra.mxu0 0.0
    %488 = vmatpush.msra.mxu0 0.0
    %489 = vmatpush.msra.mxu0 %v469
    %490 = vmatpush.msra.mxu0 %v468
    %491 = vmatpush.msra.mxu0 %v467
    %492 = vmatpush.msra.mxu0 %v466
    %493 = vmatmul.f32.gmra.mxu0 %v475
    %v494 = vpop.f32.mrf.mxu0
    %v495 = vadd.f32 %v472, %v494
    %496 = vdwg.mxu0
    %v497 = vmax.f32 %v495, 0.0
    %v498 = vld [vmem:[%s47] sm:$0xff]
    %v499 = vld [vmem:[%s47 + $0x8] sm:$0xff]
    %v500 = vld [vmem:[%s49] sm:$0x1]
    %v502 = vperm.slane %v500, 0
    %v505 = vsel %vm278, %v497, 0
    %507 = vmatpush.msra.mxu0 0.0
    %508 = vmatpush.msra.mxu0 0.0
    %509 = vmatpush.msra.mxu0 0.0
    %510 = vmatpush.msra.mxu0 0.0
    %511 = vmatpush.msra.mxu0 0.0
    %512 = vmatpush.msra.mxu0 0.0
    %513 = vmatpush.msra.mxu0 0.0
    %514 = vmatpush.msra.mxu0 0.0
    %515 = vmatpush.msra.mxu0 0.0
    %516 = vmatpush.msra.mxu0 0.0
    %517 = vmatpush.msra.mxu0 0.0
    %518 = vmatpush.msra.mxu0 0.0
    %519 = vmatpush.msra.mxu0 0.0
    %520 = vmatpush.msra.mxu0 0.0
    %521 = vmatpush.msra.mxu0 %v499
    %522 = vmatpush.msra.mxu0 %v498
    %523 = vmatmul.f32.gmra.mxu0 %v505
    %v524 = vpop.f32.mrf.mxu0
    %v525 = vadd.f32 %v502, %v524
    %526 = vdwg.mxu0
    %v527 = vmax.f32 %v525, 0.0
    %v528 = vld [vmem:[%s51] sm:$0xff]
    %v529 = vld [vmem:[%s51 + $0x8] sm:$0xff]
    %v530 = vld [vmem:[#allocation2] sm:$0x1]
    %v532 = vperm.slane %v530, 0
    %v535 = vsel %vm278, %v527, 0
    %537 = vmatpush.msra.mxu0 0.0
    %538 = vmatpush.msra.mxu0 0.0
    %539 = vmatpush.msra.mxu0 0.0
    %540 = vmatpush.msra.mxu0 0.0
    %541 = vmatpush.msra.mxu0 0.0
    %542 = vmatpush.msra.mxu0 0.0
    %543 = vmatpush.msra.mxu0 0.0
    %544 = vmatpush.msra.mxu0 0.0
    %545 = vmatpush.msra.mxu0 0.0
    %546 = vmatpush.msra.mxu0 0.0
    %547 = vmatpush.msra.mxu0 0.0
    %548 = vmatpush.msra.mxu0 0.0
    %549 = vmatpush.msra.mxu0 0.0
    %550 = vmatpush.msra.mxu0 0.0
    %551 = vmatpush.msra.mxu0 %v529
    %552 = vmatpush.msra.mxu0 %v528
    %553 = vmatmul.f32.gmra.mxu0 %v535
    %v554 = vpop.f32.mrf.mxu0
    %v555 = vadd.f32 %v532, %v554
    %556 = vdwg.mxu0
    %v557 = vld [vmem:[%s55] sm:$0xff]
    %v558 = vld [vmem:[%s55 + $0x8] sm:$0xff]
    %v559 = vld [vmem:[%s57] sm:$0x1]
    %v561 = vperm.slane %v559, 0
    %v564 = vsel %vm278, %v362, 0
    %566 = vmatpush.msra.mxu0 0.0
    %567 = vmatpush.msra.mxu0 0.0
    %568 = vmatpush.msra.mxu0 0.0
    %569 = vmatpush.msra.mxu0 0.0
    %570 = vmatpush.msra.mxu0 0.0
    %571 = vmatpush.msra.mxu0 0.0
    %572 = vmatpush.msra.mxu0 0.0
    %573 = vmatpush.msra.mxu0 0.0
    %574 = vmatpush.msra.mxu0 0.0
    %575 = vmatpush.msra.mxu0 0.0
    %576 = vmatpush.msra.mxu0 0.0
    %577 = vmatpush.msra.mxu0 0.0
    %578 = vmatpush.msra.mxu0 0.0
    %579 = vmatpush.msra.mxu0 0.0
    %580 = vmatpush.msra.mxu0 %v558
    %581 = vmatpush.msra.mxu0 %v557
    %582 = vmatmul.f32.gmra.mxu0 %v564
    %v583 = vpop.f32.mrf.mxu0
    %v584 = vadd.f32 %v561, %v583
    %585 = vdwg.mxu0
    %v586 = vmax.f32 %v584, 0.0
    %v587 = vld [vmem:[%s59] sm:$0xff]
    %v588 = vld [vmem:[%s59 + $0x8] sm:$0xff]
    %v589 = vld [vmem:[%s61] sm:$0x1]
    %v591 = vperm.slane %v589, 0
    %v594 = vsel %vm278, %v586, 0
    %596 = vmatpush.msra.mxu0 0.0
    %597 = vmatpush.msra.mxu0 0.0
    %598 = vmatpush.msra.mxu0 0.0
    %599 = vmatpush.msra.mxu0 0.0
    %600 = vmatpush.msra.mxu0 0.0
    %601 = vmatpush.msra.mxu0 0.0
    %602 = vmatpush.msra.mxu0 0.0
    %603 = vmatpush.msra.mxu0 0.0
    %604 = vmatpush.msra.mxu0 0.0
    %605 = vmatpush.msra.mxu0 0.0
    %606 = vmatpush.msra.mxu0 0.0
    %607 = vmatpush.msra.mxu0 0.0
    %608 = vmatpush.msra.mxu0 0.0
    %609 = vmatpush.msra.mxu0 0.0
    %610 = vmatpush.msra.mxu0 %v588
    %611 = vmatpush.msra.mxu0 %v587
    %612 = vmatmul.f32.gmra.mxu0 %v594
    %v613 = vpop.f32.mrf.mxu0
    %v614 = vadd.f32 %v591, %v613
    %615 = vdwg.mxu0
    %v616 = vmax.f32 %v614, 0.0
    %v617 = vld [vmem:[%s63] sm:$0xff]
    %v618 = vld [vmem:[%s63 + $0x8] sm:$0xff]
    %v619 = vld [vmem:[#allocation3] sm:$0x1]
    %v621 = vperm.slane %v619, 0
    %v624 = vsel %vm278, %v616, 0
    %626 = vmatpush.msra.mxu0 0.0
    %627 = vmatpush.msra.mxu0 0.0
    %628 = vmatpush.msra.mxu0 0.0
    %629 = vmatpush.msra.mxu0 0.0
    %630 = vmatpush.msra.mxu0 0.0
    %631 = vmatpush.msra.mxu0 0.0
    %632 = vmatpush.msra.mxu0 0.0
    %633 = vmatpush.msra.mxu0 0.0
    %634 = vmatpush.msra.mxu0 0.0
    %635 = vmatpush.msra.mxu0 0.0
    %636 = vmatpush.msra.mxu0 0.0
    %637 = vmatpush.msra.mxu0 0.0
    %638 = vmatpush.msra.mxu0 0.0
    %639 = vmatpush.msra.mxu0 0.0
    %640 = vmatpush.msra.mxu0 %v618
    %641 = vmatpush.msra.mxu0 %v617
    %642 = vmatmul.f32.gmra.mxu0 %v624
    %v643 = vpop.f32.mrf.mxu0
    %v644 = vadd.f32 %v621, %v643
    %645 = vdwg.mxu0
    %v646 = vld [vmem:[%s67] sm:$0xff]
    %v647 = vld [vmem:[%s67 + $0x8] sm:$0xff]
    %v648 = vld [vmem:[%s69] sm:$0x1]
    %v650 = vperm.slane %v648, 0
    %v653 = vsel %vm278, %v465, 0
    %655 = vmatpush.msra.mxu0 0.0
    %656 = vmatpush.msra.mxu0 0.0
    %657 = vmatpush.msra.mxu0 0.0
    %658 = vmatpush.msra.mxu0 0.0
    %659 = vmatpush.msra.mxu0 0.0
    %660 = vmatpush.msra.mxu0 0.0
    %661 = vmatpush.msra.mxu0 0.0
    %662 = vmatpush.msra.mxu0 0.0
    %663 = vmatpush.msra.mxu0 0.0
    %664 = vmatpush.msra.mxu0 0.0
    %665 = vmatpush.msra.mxu0 0.0
    %666 = vmatpush.msra.mxu0 0.0
    %667 = vmatpush.msra.mxu0 0.0
    %668 = vmatpush.msra.mxu0 0.0
    %669 = vmatpush.msra.mxu0 %v647
    %670 = vmatpush.msra.mxu0 %v646
    %671 = vmatmul.f32.gmra.mxu0 %v653
    %v672 = vpop.f32.mrf.mxu0
    %v673 = vadd.f32 %v650, %v672
    %674 = vdwg.mxu0
    %v675 = vmax.f32 %v673, 0.0
    %v676 = vld [vmem:[%s71] sm:$0xff]
    %v677 = vld [vmem:[%s71 + $0x8] sm:$0xff]
    %v678 = vld [vmem:[%s73] sm:$0x1]
    %v680 = vperm.slane %v678, 0
    %v683 = vsel %vm278, %v675, 0
    %685 = vmatpush.msra.mxu0 0.0
    %686 = vmatpush.msra.mxu0 0.0
    %687 = vmatpush.msra.mxu0 0.0
    %688 = vmatpush.msra.mxu0 0.0
    %689 = vmatpush.msra.mxu0 0.0
    %690 = vmatpush.msra.mxu0 0.0
    %691 = vmatpush.msra.mxu0 0.0
    %692 = vmatpush.msra.mxu0 0.0
    %693 = vmatpush.msra.mxu0 0.0
    %694 = vmatpush.msra.mxu0 0.0
    %695 = vmatpush.msra.mxu0 0.0
    %696 = vmatpush.msra.mxu0 0.0
    %697 = vmatpush.msra.mxu0 0.0
    %698 = vmatpush.msra.mxu0 0.0
    %699 = vmatpush.msra.mxu0 %v677
    %700 = vmatpush.msra.mxu0 %v676
    %701 = vmatmul.f32.gmra.mxu0 %v683
    %v702 = vpop.f32.mrf.mxu0
    %v703 = vadd.f32 %v680, %v702
    %704 = vdwg.mxu0
    %v705 = vmax.f32 %v703, 0.0
    %v706 = vld [vmem:[%s75] sm:$0xff]
    %v707 = vld [vmem:[%s75 + $0x8] sm:$0xff]
    %v708 = vld [vmem:[#allocation4] sm:$0x1]
    %v710 = vperm.slane %v708, 0
    %v713 = vsel %vm278, %v705, 0
    %715 = vmatpush.msra.mxu0 0.0
    %716 = vmatpush.msra.mxu0 0.0
    %717 = vmatpush.msra.mxu0 0.0
    %718 = vmatpush.msra.mxu0 0.0
    %719 = vmatpush.msra.mxu0 0.0
    %720 = vmatpush.msra.mxu0 0.0
    %721 = vmatpush.msra.mxu0 0.0
    %722 = vmatpush.msra.mxu0 0.0
    %723 = vmatpush.msra.mxu0 0.0
    %724 = vmatpush.msra.mxu0 0.0
    %725 = vmatpush.msra.mxu0 0.0
    %726 = vmatpush.msra.mxu0 0.0
    %727 = vmatpush.msra.mxu0 0.0
    %728 = vmatpush.msra.mxu0 0.0
    %729 = vmatpush.msra.mxu0 %v707
    %730 = vmatpush.msra.mxu0 %v706
    %731 = vmatmul.f32.gmra.mxu0 %v713
    %v732 = vpop.f32.mrf.mxu0
    %v733 = vadd.f32 %v710, %v732
    %734 = vdwg.mxu0
    %v735 = vld [vmem:[%s79] sm:$0xff]
    %v736 = vld [vmem:[%s79 + $0x8] sm:$0xff]
    %v737 = vld [vmem:[%s81] sm:$0xff]
    %v738 = vld [vmem:[%s81 + $0x8] sm:$0xff]
    %739 = vmatpush.msra.mxu0 0.0
    %740 = vmatpush.msra.mxu0 0.0
    %741 = vmatpush.msra.mxu0 0.0
    %742 = vmatpush.msra.mxu0 0.0
    %743 = vmatpush.msra.mxu0 0.0
    %744 = vmatpush.msra.mxu0 0.0
    %745 = vmatpush.msra.mxu0 0.0
    %746 = vmatpush.msra.mxu0 0.0
    %747 = vmatpush.msra.mxu0 0.0
    %748 = vmatpush.msra.mxu0 0.0
    %749 = vmatpush.msra.mxu0 0.0
    %750 = vmatpush.msra.mxu0 0.0
    %751 = vmatpush.msra.mxu0 0.0
    %752 = vmatpush.msra.mxu0 0.0
    %753 = vmatpush.msra.mxu0 %v738
    %754 = vmatpush.msra.mxu0 %v737
    %755 = vmatmul.f32.gmra.mxu0 %v624
    %v756 = vpop.f32.mrf.mxu0
    %v757 = vadd.f32 0.0, %v756
    %758 = vdwg.mxu0
    %759 = vmatpush.msra.mxu0 0.0
    %760 = vmatpush.msra.mxu0 0.0
    %761 = vmatpush.msra.mxu0 0.0
    %762 = vmatpush.msra.mxu0 0.0
    %763 = vmatpush.msra.mxu0 0.0
    %764 = vmatpush.msra.mxu0 0.0
    %765 = vmatpush.msra.mxu0 0.0
    %766 = vmatpush.msra.mxu0 0.0
    %767 = vmatpush.msra.mxu0 0.0
    %768 = vmatpush.msra.mxu0 0.0
    %769 = vmatpush.msra.mxu0 0.0
    %770 = vmatpush.msra.mxu0 0.0
    %771 = vmatpush.msra.mxu0 0.0
    %772 = vmatpush.msra.mxu0 0.0
    %773 = vmatpush.msra.mxu0 %v736
    %774 = vmatpush.msra.mxu0 %v735
    %775 = vmatmul.f32.gmra.mxu0 %v535
    %v776 = vpop.f32.mrf.mxu0
    %v777 = vadd.f32 %v757, %v776
    %778 = vdwg.mxu0
    %v779 = vld [vmem:[%s83] sm:$0xff]
    %v780 = vld [vmem:[%s83 + $0x8] sm:$0xff]
    %781 = vmatpush.msra.mxu0 0.0
    %782 = vmatpush.msra.mxu0 0.0
    %783 = vmatpush.msra.mxu0 0.0
    %784 = vmatpush.msra.mxu0 0.0
    %785 = vmatpush.msra.mxu0 0.0
    %786 = vmatpush.msra.mxu0 0.0
    %787 = vmatpush.msra.mxu0 0.0
    %788 = vmatpush.msra.mxu0 0.0
    %789 = vmatpush.msra.mxu0 0.0
    %790 = vmatpush.msra.mxu0 0.0
    %791 = vmatpush.msra.mxu0 0.0
    %792 = vmatpush.msra.mxu0 0.0
    %793 = vmatpush.msra.mxu0 0.0
    %794 = vmatpush.msra.mxu0 0.0
    %795 = vmatpush.msra.mxu0 %v780
    %796 = vmatpush.msra.mxu0 %v779
    %797 = vmatmul.f32.gmra.mxu0 %v713
    %v798 = vpop.f32.mrf.mxu0
    %v799 = vadd.f32 0.0, %v798
    %800 = vdwg.mxu0
    %v801 = vadd.f32 %v777, %v799
    %v802 = vld [vmem:[%s85] sm:$0x1]
    %v804 = vperm.slane %v802, 0
    %v806 = vadd.f32 %v801, %v804
    %v807 = vld [vmem:[%s87] sm:$0xff]
    %v808 = vld [vmem:[%s87 + $0x8] sm:$0xff]
    %v809 = vld [vmem:[#allocation6] sm:$0x1]
    %v811 = vperm.slane %v809, 0
    %v814 = vsel %vm278, %v806, 0
    %816 = vmatpush.msra.mxu0 0.0
    %817 = vmatpush.msra.mxu0 0.0
    %818 = vmatpush.msra.mxu0 0.0
    %819 = vmatpush.msra.mxu0 0.0
    %820 = vmatpush.msra.mxu0 0.0
    %821 = vmatpush.msra.mxu0 0.0
    %822 = vmatpush.msra.mxu0 0.0
    %823 = vmatpush.msra.mxu0 0.0
    %824 = vmatpush.msra.mxu0 0.0
    %825 = vmatpush.msra.mxu0 0.0
    %826 = vmatpush.msra.mxu0 0.0
    %827 = vmatpush.msra.mxu0 0.0
    %828 = vmatpush.msra.mxu0 0.0
    %829 = vmatpush.msra.mxu0 0.0
    %830 = vmatpush.msra.mxu0 %v808
    %831 = vmatpush.msra.mxu0 %v807
    %832 = vmatmul.f32.gmra.mxu0 %v814
    %v833 = vpop.f32.mrf.mxu0
    %v834 = vadd.f32 %v811, %v833
    %835 = vdwg.mxu0
    %v836 = vld [vmem:[%s91] sm:$0xff]
    %v837 = vld [vmem:[%s91 + $0x8] sm:$0xff]
    %v838 = vld [vmem:[#allocation5] sm:$0x1]
    %v840 = vperm.slane %v838, 0
    %v843 = vsel %vm278, %v834, 0
    %845 = vmatpush.msra.mxu0 0.0
    %846 = vmatpush.msra.mxu0 0.0
    %847 = vmatpush.msra.mxu0 0.0
    %848 = vmatpush.msra.mxu0 0.0
    %849 = vmatpush.msra.mxu0 0.0
    %850 = vmatpush.msra.mxu0 0.0
    %851 = vmatpush.msra.mxu0 0.0
    %852 = vmatpush.msra.mxu0 0.0
    %853 = vmatpush.msra.mxu0 0.0
    %854 = vmatpush.msra.mxu0 0.0
    %855 = vmatpush.msra.mxu0 0.0
    %856 = vmatpush.msra.mxu0 0.0
    %857 = vmatpush.msra.mxu0 0.0
    %858 = vmatpush.msra.mxu0 0.0
    %859 = vmatpush.msra.mxu0 %v837
    %860 = vmatpush.msra.mxu0 %v836
    %861 = vmatmul.f32.gmra.mxu0 %v843
    %v862 = vpop.f32.mrf.mxu0
    %v863 = vadd.f32 %v840, %v862
    %864 = vdwg.mxu0
    %v865 = vxor.u32 %v863, 2147483648
    %v866 = vmul.f32 %v865, 1.442695
    %v867 = vpow.pop %v866
    %v868 = vadd.f32 %v867, 1.0
    %v869 = vrcp.pop %v868
    %v870 = vmul.f32 %v868, %v869
    %v871 = vsub.f32 1.0, %v870
    %v872 = vmul.f32 %v869, %v871
    %v873 = vadd.f32 %v869, %v872
    %vm874 = vweird.f32 %v868
    %vm875 = vweird.f32 %v869
    %vm876 = vmor %vm874, %vm875
    %v877 = vsel %vm876, %v869, %v873
    %v878 = vand.u32 2147483647, %v868
    %vm879 = vcmp.eq.f32.partialorder %v878, 8.507059e+37
    %v880 = vand.u32 %v868, 2147483648
    %v881 = vor.u32 1.1754944e-38, %v880
    %v882 = vsel %vm879, %v881, %v877
    %v883 = vmul.f32 1.0, %v882
    %v884 = vmul.f32 %v883, 2.0
    %v885 = vsub.f32 %v884, 1.0
    %886 = vst.msk [vmem:[#allocation9] sm:$0xff] %vm278, %v527
    %887 = vst.msk [vmem:[#allocation10] sm:$0xff] %vm278, %v616
    %888 = vst.msk [vmem:[#allocation12] sm:$0xff] %vm278, %v705
    %889 = vst.msk [vmem:[#allocation13] sm:$0xff] %vm278, %v834
    %891 = vrot.lane.b32.xlu0 %v644, 1
    %v892 = vpop.permute.xlu0 %891
    %895 = vrot.lane.b32.xlu0 %v733, 2
    %v896 = vpop.permute.xlu0 %895
    %899 = vrot.lane.b32.xlu0 %v885, 3
    %v900 = vpop.permute.xlu0 %899
    %vm902 = vcmask 7168
    %v903 = vsel %vm902, %v555, %v892
    %vm904 = vcmask 15360
    %v905 = vsel %vm904, %v903, %v896
    %vm906 = vcmask 23552
    %v907 = vsel %vm906, %v905, %v900
    %vm908 = vcmask 31744
    %909 = vst.msk [vmem:[%s103] sm:$0xff] %vm908, %v907
    // Predicated region
    $region194: #{_lambda_.1} parent=1 // pred_check
      _
    $region195: #{_lambda_.1} parent=1 // pred_check_branch
      %911 = sbr.rel (0) target = $region197
    $region196: #{_lambda_.1} parent=1 // pred_region
      %913 = vsyncadd [#allocation8], 0
      %s915 = sshll.u32 [#allocation9], 4
      %s916 = int_to_ptr.vmem [resolvable:$true] %s915
      %s917 = sshll.u32 %s95, 4
      %s918 = int_to_ptr.hbm [resolvable:$true] %s917
      %920 = dma.vmem_to_hbm [thread:$0]  %s916, 128, %s918, [#allocation8]
    $region197: #{_lambda_.1} parent=1 // pred_fallthru
      _
    // Predicated region
    $region198: #{_lambda_.1} parent=1 // pred_check
      _
    $region199: #{_lambda_.1} parent=1 // pred_check_branch
      %922 = sbr.rel (0) target = $region201
    $region200: #{_lambda_.1} parent=1 // pred_region
      %924 = vsyncadd [#allocation11], 0
      %s926 = sshll.u32 [#allocation10], 4
      %s927 = int_to_ptr.vmem [resolvable:$true] %s926
      %s928 = sshll.u32 %s97, 4
      %s929 = int_to_ptr.hbm [resolvable:$true] %s928
      %931 = dma.vmem_to_hbm [thread:$0]  %s927, 128, %s929, [#allocation11]
    $region201: #{_lambda_.1} parent=1 // pred_fallthru
      _
    // Predicated region
    $region202: #{_lambda_.1} parent=1 // pred_check
      _
    $region203: #{_lambda_.1} parent=1 // pred_check_branch
      %933 = sbr.rel (0) target = $region205
    $region204: #{_lambda_.1} parent=1 // pred_region
      %935 = vsyncadd [#allocation11], 0
      %s937 = sshll.u32 [#allocation12], 4
      %s938 = int_to_ptr.vmem [resolvable:$true] %s937
      %s939 = sshll.u32 %s99, 4
      %s940 = int_to_ptr.hbm [resolvable:$true] %s939
      %942 = dma.vmem_to_hbm [thread:$0]  %s938, 128, %s940, [#allocation11]
    $region205: #{_lambda_.1} parent=1 // pred_fallthru
      _
    // Predicated region
    $region206: #{_lambda_.1} parent=1 // pred_check
      _
    $region207: #{_lambda_.1} parent=1 // pred_check_branch
      %944 = sbr.rel (0) target = $region209
    $region208: #{_lambda_.1} parent=1 // pred_region
      %946 = vsyncadd [#allocation14], 0
      %s948 = sshll.u32 [#allocation13], 4
      %s949 = int_to_ptr.vmem [resolvable:$true] %s948
      %s950 = sshll.u32 %s101, 4
      %s951 = int_to_ptr.hbm [resolvable:$true] %s950
      %953 = dma.vmem_to_hbm [thread:$0]  %s949, 128, %s951, [#allocation14]
    $region209: #{_lambda_.1} parent=1 // pred_fallthru
      _
    // Predicated region
    $region210: #{_lambda_.1} parent=1 // pred_check
      _
    $region211: #{_lambda_.1} parent=1 // pred_check_branch
      %955 = sbr.rel (0) target = $region213
    $region212: #{_lambda_.1} parent=1 // pred_region
      _
    $region213: #{_lambda_.1} parent=1 // pred_fallthru
      _
    // Predicated region
    $region214: #{_lambda_.1} parent=1 // pred_check
      _
    $region215: #{_lambda_.1} parent=1 // pred_check_branch
      %957 = sbr.rel (0) target = $region217
    $region216: #{_lambda_.1} parent=1 // pred_region
      %959 = dma.done [#allocation8], 128
    $region217: #{_lambda_.1} parent=1 // pred_fallthru
      _
    // Predicated region
    $region218: #{_lambda_.1} parent=1 // pred_check
      _
    $region219: #{_lambda_.1} parent=1 // pred_check_branch
      %961 = sbr.rel (0) target = $region221
    $region220: #{_lambda_.1} parent=1 // pred_region
      %963 = dma.done [#allocation11], 128
    $region221: #{_lambda_.1} parent=1 // pred_fallthru
      _
    // Predicated region
    $region222: #{_lambda_.1} parent=1 // pred_check
      _
    $region223: #{_lambda_.1} parent=1 // pred_check_branch
      %965 = sbr.rel (0) target = $region225
    $region224: #{_lambda_.1} parent=1 // pred_region
      %967 = dma.done [#allocation11], 128
    $region225: #{_lambda_.1} parent=1 // pred_fallthru
      _
    // Predicated region
    $region226: #{_lambda_.1} parent=1 // pred_check
      _
    $region227: #{_lambda_.1} parent=1 // pred_check_branch
      %969 = sbr.rel (0) target = $region229
    $region228: #{_lambda_.1} parent=1 // pred_region
      %971 = dma.done [#allocation14], 128
    $region229: #{_lambda_.1} parent=1 // pred_fallthru
      _
    // Predicated region
    $region230: #{_lambda_.1} parent=1 // pred_check
      _
    $region231: #{_lambda_.1} parent=1 // pred_check_branch
      %973 = sbr.rel (0) target = $region233
    $region232: #{_lambda_.1} parent=1 // pred_region
      _
    $region233: #{_lambda_.1} parent=1 // pred_fallthru
      _
    %974 = vsyncpa [#allocation7], 1
    %975 = vsyncpa [#allocation8], 1
    %976 = vsyncpa [#allocation11], 1
    %977 = vsyncpa [#allocation14], 1

</llo_original>
